<compile_context>
chip_gen: v6e
topology: v6e:2x2x1
jax: 0.10.0
libtpu: 0.0.40
codegen_flags: <defaults>
</compile_context>

<pallas_src>
import jax
import jax.numpy as jnp
from jax.experimental import pallas as pl
from jax.experimental.pallas import tpu as pltpu

# ----- problem sizes (small, consistent with the module) -----
B, L, D = 2, 16, 32            # batch, sequence length, input_dim
C_OUT = 256                    # out channels per conv
KS = (3, 4, 5)                 # kernel sizes
# PyTorch padding='same' (stride=1): left = (k-1)//2, right = (k-1) - left
LEFTS = tuple((k - 1) // 2 for k in KS)
RIGHTS = tuple((k - 1) - l for k, l in zip(KS, LEFTS))
N_OUT = len(KS) * C_OUT        # 768
BL = B * L                     # 32 im2col rows
N_TAPS = sum(KS)               # 12 real (conv, tap) blocks -> no zero padding
W_COLS = N_TAPS * C_OUT        # 3072 packed bf16 weight columns


def textcnn_kernel(x_ref, w_ref, b_ref, o_ref):
    # x_ref: (BL, D) f32    w_ref: (D, N_TAPS*C_OUT) bf16
    # b_ref: (1, N_OUT) f32 o_ref: (B, N_OUT) f32
    x = x_ref[...]

    # Position-in-sequence of each row (rows are batch-major, L per batch).
    t = jax.lax.broadcasted_iota(jnp.int32, (BL, D), 0) % L

    # One shifted + masked column per distinct tap offset (built lazily,
    # cached across convs).  The mask implements the 'same' zero padding AND
    # blocks cross-batch / roll wrap-around leakage of the flat (B*L) layout.
    def make_col(o):
        if o == 0:
            return x.astype(jnp.bfloat16)
        shifted = pltpu.roll(x, shift=(-o) % BL, axis=0)
        valid = jnp.logical_and(t + o >= 0, t + o < L)
        return jnp.where(valid, shifted, 0.0).astype(jnp.bfloat16)

    cols = {}

    # K-split accumulation: 12 small bf16 MXU dots into f32 per-conv accs.
    slot = 0
    conv_outs = []
    for ci, (k, left) in enumerate(zip(KS, LEFTS)):
        acc = jnp.zeros((BL, C_OUT), jnp.float32)
        for j in range(k):                              # static -> unrolled
            o = j - left
            if o not in cols:
                cols[o] = make_col(o)
            w_tap = w_ref[:, slot * C_OUT:(slot + 1) * C_OUT]   # (D, 256) bf16
            acc = acc + jnp.dot(cols[o], w_tap,
                                preferred_element_type=jnp.float32)
            slot += 1
        # fused bias + ReLU epilogue (f32)
        conv_outs.append(
            jnp.maximum(acc + b_ref[:, ci * C_OUT:(ci + 1) * C_OUT], 0.0))

    # Lane-aligned concat (each piece is 256 lanes = 2 vregs) -> (BL, 768).
    y = jnp.concatenate(conv_outs, axis=-1)

    # Global max-pool over the sequence per batch, fused into ONE (B, 768) store.
    pooled = jnp.concatenate(
        [jnp.max(y[b * L:(b + 1) * L, :], axis=0, keepdims=True)
         for b in range(B)], axis=0)
    o_ref[...] = pooled


def pack_params(params):
    """One-time prep: pack torch-layout conv params [(w:(C_OUT,D,k), b:(C_OUT,))]
    into a zero-free, lane-contiguous (D, sum(k)*C_OUT) bf16 weight slab (one
    D x C_OUT block per real (conv, tap) pair, in kernel traversal order) plus
    an f32 (1, N_OUT) bias."""
    blocks = []
    b_parts = []
    for (w, b) in params:
        k = w.shape[-1]
        for j in range(k):
            blocks.append(w[:, :, j].T)                 # (D, C_OUT)
        b_parts.append(b)
    w_packed = jnp.concatenate(blocks, axis=1).astype(jnp.bfloat16)  # (D, 3072)
    b_packed = jnp.concatenate(b_parts).reshape(1, N_OUT).astype(jnp.float32)
    return w_packed, b_packed


_COST = pl.CostEstimate(
    flops=2 * BL * D * W_COLS,               # 12 dots of (32,32)x(32,256)
    transcendentals=0,
    bytes_accessed=(BL * D * 4               # x (f32)
                    + D * W_COLS * 2         # packed weight (bf16) -- dominant
                    + N_OUT * 4              # bias (f32)
                    + B * N_OUT * 4))        # output (f32)


@jax.jit
def textcnn_forward(x, w_packed, b_packed):
    """x: (B, L, D) float32 channels-last (torch's x.permute(0, 2, 1) is absorbed)."""
    x_flat = x.reshape(BL, D)                # row-major no-op reshape
    return pl.pallas_call(
        textcnn_kernel,
        out_shape=jax.ShapeDtypeStruct((B, N_OUT), jnp.float32),
        grid=(1,),
        in_specs=[
            pl.BlockSpec((BL, D), lambda i: (0, 0)),        # x (whole batch)
            pl.BlockSpec((D, W_COLS), lambda i: (0, 0)),    # packed bf16 weights
            pl.BlockSpec((1, N_OUT), lambda i: (0, 0)),     # packed f32 bias
        ],
        out_specs=pl.BlockSpec((B, N_OUT), lambda i: (0, 0)),
        compiler_params=pltpu.CompilerParams(
            dimension_semantics=("arbitrary",)),
        cost_estimate=_COST,
    )(x_flat, w_packed, b_packed)


def ref_forward(x, params):
    """Pure-JAX f32 reference mirroring the PyTorch forward (NCL conv, 'same' pad)."""
    xc = jnp.transpose(x, (0, 2, 1))         # (B, D, L) -- torch x.permute(0, 2, 1)
    outs = []
    for (w, b), left, right in zip(params, LEFTS, RIGHTS):
        y = jax.lax.conv_general_dilated(
            xc, w, window_strides=(1,), padding=[(left, right)],
            dimension_numbers=("NCH", "OIH", "NCH"))
        y = jax.nn.relu(y + b[None, :, None])
        outs.append(jnp.max(y, axis=2))      # max_pool1d over full length, squeeze
    return jnp.concatenate(outs, axis=1)     # (B, 768)


def init_params(key):
    """Deterministic init; shapes match nn.Conv1d(input_dim, 256, k)."""
    params = []
    for i, k in enumerate(KS):
        kw, kb = jax.random.split(jax.random.fold_in(key, i))
        bound = 1.0 / jnp.sqrt(D * k)
        w = jax.random.uniform(kw, (C_OUT, D, k), jnp.float32, -bound, bound)
        b = jax.random.uniform(kb, (C_OUT,), jnp.float32, -bound, bound)
        params.append((w, b))
    return params


if __name__ == "__main__":
    key = jax.random.PRNGKey(0)
    kx, kp = jax.random.split(key)
    x = jax.random.normal(kx, (B, L, D), jnp.float32)
    params = init_params(kp)
    w_packed, b_packed = pack_params(params)   # one-time weight packing (hoisted)

    out = jax.block_until_ready(textcnn_forward(x, w_packed, b_packed))
    assert out.shape == (B, N_OUT), out.shape

    ref = ref_forward(x, params)
    # bf16 matmul operands (f32 accumulation): loosened tolerance vs f32 reference.
    assert jnp.allclose(out, ref, atol=2e-2, rtol=2e-2), \
        float(jnp.max(jnp.abs(out - ref)))

    print("KERNEL_OK")
</pallas_src>

<mosaic_0001>
module attributes {stable_mosaic.version = 11 : i64} {
  func.func @textcnn_kernel(%arg0: i32, %arg1: memref<32x32xf32, #tpu.memory_space<vmem>>, %arg2: memref<32x3072xbf16, #tpu.memory_space<vmem>>, %arg3: memref<1x768xf32, #tpu.memory_space<vmem>>, %arg4: memref<2x768xf32, #tpu.memory_space<vmem>>) attributes {dimension_semantics = [#tpu.dimension_semantics<arbitrary>], iteration_bounds = array<i64: 1>, scalar_prefetch = 0 : i64, scratch_operands = 0 : i64, tpu.core_type = #tpu.core_type<tc>, window_params = [{pipeline_mode = #tpu.pipeline_mode<synchronous>, transform_indices = @transform_0, window_bounds = array<i64: 32, 32>}, {pipeline_mode = #tpu.pipeline_mode<synchronous>, transform_indices = @transform_1, window_bounds = array<i64: 32, 3072>}, {pipeline_mode = #tpu.pipeline_mode<synchronous>, transform_indices = @transform_2, window_bounds = array<i64: 1, 768>}, {pipeline_mode = #tpu.pipeline_mode<synchronous>, transform_indices = @transform_3, window_bounds = array<i64: 2, 768>}]} {
    %c0 = arith.constant 0 : index
    %c0_0 = arith.constant 0 : index
    %0 = vector.load %arg1[%c0, %c0_0] : memref<32x32xf32, #tpu.memory_space<vmem>>, vector<32x32xf32>
    %1 = tpu.iota {dimensions = array<i32: 0>} : vector<32x32xi32>
    %c16_i32 = arith.constant 16 : i32
    %c0_i32 = arith.constant 0 : i32
    %2 = arith.cmpi eq, %c16_i32, %c0_i32 : i32
    %c1_i32 = arith.constant 1 : i32
    %3 = arith.select %2, %c1_i32, %c16_i32 : i32
    %4 = vector.broadcast %3 : i32 to vector<32x32xi32>
    %5 = arith.remsi %1, %4 : vector<32x32xi32>
    %c0_i32_1 = arith.constant 0 : i32
    %6 = vector.broadcast %c0_i32_1 : i32 to vector<32x32xi32>
    %7 = arith.cmpi ne, %5, %6 : vector<32x32xi32>
    %c0_i32_2 = arith.constant 0 : i32
    %8 = vector.broadcast %c0_i32_2 : i32 to vector<32x32xi32>
    %9 = arith.cmpi slt, %5, %8 : vector<32x32xi32>
    %c0_i32_3 = arith.constant 0 : i32
    %10 = arith.cmpi slt, %3, %c0_i32_3 : i32
    %11 = vector.broadcast %10 : i1 to vector<32x32xi1>
    %12 = vector.broadcast %11 : vector<32x32xi1> to vector<32x32xi1>
    %13 = arith.xori %9, %12 : vector<32x32xi1>
    %14 = arith.andi %13, %7 : vector<32x32xi1>
    %15 = vector.broadcast %3 : i32 to vector<32x32xi32>
    %16 = arith.addi %5, %15 : vector<32x32xi32>
    %17 = arith.select %14, %16, %5 : vector<32x32xi1>, vector<32x32xi32>
    %cst = arith.constant 0.000000e+00 : f32
    %18 = vector.broadcast %cst : f32 to vector<32x256xf32>
    %c1_i32_4 = arith.constant 1 : i32
    %19 = tpu.dynamic_rotate %0 by %c1_i32_4 dim 0 : vector<32x32xf32>, i32 -> vector<32x32xf32>
    %c-1_i32 = arith.constant -1 : i32
    %20 = vector.broadcast %c-1_i32 : i32 to vector<32x32xi32>
    %21 = arith.addi %17, %20 : vector<32x32xi32>
    %c0_i32_5 = arith.constant 0 : i32
    %22 = vector.broadcast %c0_i32_5 : i32 to vector<32x32xi32>
    %23 = arith.cmpi sge, %21, %22 : vector<32x32xi32>
    %c-1_i32_6 = arith.constant -1 : i32
    %24 = vector.broadcast %c-1_i32_6 : i32 to vector<32x32xi32>
    %25 = arith.addi %17, %24 : vector<32x32xi32>
    %c16_i32_7 = arith.constant 16 : i32
    %26 = vector.broadcast %c16_i32_7 : i32 to vector<32x32xi32>
    %27 = arith.cmpi slt, %25, %26 : vector<32x32xi32>
    %28 = arith.andi %23, %27 : vector<32x32xi1>
    %cst_8 = arith.constant 0.000000e+00 : f32
    %29 = vector.broadcast %cst_8 : f32 to vector<32x32xf32>
    %30 = arith.select %28, %19, %29 : vector<32x32xi1>, vector<32x32xf32>
    %31 = arith.truncf %30 : vector<32x32xf32> to vector<32x32xbf16>
    %c0_9 = arith.constant 0 : index
    %c0_10 = arith.constant 0 : index
    %32 = vector.load %arg2[%c0_9, %c0_10] : memref<32x3072xbf16, #tpu.memory_space<vmem>>, vector<32x256xbf16>
    %cst_11 = arith.constant dense<0.000000e+00> : vector<32x256xf32>
    %33 = tpu.matmul %31, %32, %cst_11 {dimension_numbers = #tpu.dot_dimension_numbers<[1], [0], [0], [1], [0, 0, 1, 1], [], []>} : vector<32x32xbf16>, vector<32x256xbf16>, vector<32x256xf32> -> vector<32x256xf32>
    %34 = arith.addf %18, %33 : vector<32x256xf32>
    %35 = arith.truncf %0 : vector<32x32xf32> to vector<32x32xbf16>
    %c0_12 = arith.constant 0 : index
    %c256 = arith.constant 256 : index
    %36 = vector.load %arg2[%c0_12, %c256] : memref<32x3072xbf16, #tpu.memory_space<vmem>>, vector<32x256xbf16>
    %cst_13 = arith.constant dense<0.000000e+00> : vector<32x256xf32>
    %37 = tpu.matmul %35, %36, %cst_13 {dimension_numbers = #tpu.dot_dimension_numbers<[1], [0], [0], [1], [0, 0, 1, 1], [], []>} : vector<32x32xbf16>, vector<32x256xbf16>, vector<32x256xf32> -> vector<32x256xf32>
    %38 = arith.addf %34, %37 : vector<32x256xf32>
    %c31_i32 = arith.constant 31 : i32
    %39 = tpu.dynamic_rotate %0 by %c31_i32 dim 0 : vector<32x32xf32>, i32 -> vector<32x32xf32>
    %c1_i32_14 = arith.constant 1 : i32
    %40 = vector.broadcast %c1_i32_14 : i32 to vector<32x32xi32>
    %41 = arith.addi %17, %40 : vector<32x32xi32>
    %c0_i32_15 = arith.constant 0 : i32
    %42 = vector.broadcast %c0_i32_15 : i32 to vector<32x32xi32>
    %43 = arith.cmpi sge, %41, %42 : vector<32x32xi32>
    %c1_i32_16 = arith.constant 1 : i32
    %44 = vector.broadcast %c1_i32_16 : i32 to vector<32x32xi32>
    %45 = arith.addi %17, %44 : vector<32x32xi32>
    %c16_i32_17 = arith.constant 16 : i32
    %46 = vector.broadcast %c16_i32_17 : i32 to vector<32x32xi32>
    %47 = arith.cmpi slt, %45, %46 : vector<32x32xi32>
    %48 = arith.andi %43, %47 : vector<32x32xi1>
    %cst_18 = arith.constant 0.000000e+00 : f32
    %49 = vector.broadcast %cst_18 : f32 to vector<32x32xf32>
    %50 = arith.select %48, %39, %49 : vector<32x32xi1>, vector<32x32xf32>
    %51 = arith.truncf %50 : vector<32x32xf32> to vector<32x32xbf16>
    %c0_19 = arith.constant 0 : index
    %c512 = arith.constant 512 : index
    %52 = vector.load %arg2[%c0_19, %c512] : memref<32x3072xbf16, #tpu.memory_space<vmem>>, vector<32x256xbf16>
    %cst_20 = arith.constant dense<0.000000e+00> : vector<32x256xf32>
    %53 = tpu.matmul %51, %52, %cst_20 {dimension_numbers = #tpu.dot_dimension_numbers<[1], [0], [0], [1], [0, 0, 1, 1], [], []>} : vector<32x32xbf16>, vector<32x256xbf16>, vector<32x256xf32> -> vector<32x256xf32>
    %54 = arith.addf %38, %53 : vector<32x256xf32>
    %c0_21 = arith.constant 0 : index
    %c0_22 = arith.constant 0 : index
    %55 = vector.load %arg3[%c0_21, %c0_22] : memref<1x768xf32, #tpu.memory_space<vmem>>, vector<1x256xf32>
    %56 = vector.broadcast %55 : vector<1x256xf32> to vector<32x256xf32>
    %57 = arith.addf %54, %56 : vector<32x256xf32>
    %cst_23 = arith.constant 0.000000e+00 : f32
    %58 = vector.broadcast %cst_23 : f32 to vector<32x256xf32>
    %59 = arith.maximumf %57, %58 : vector<32x256xf32>
    %cst_24 = arith.constant 0.000000e+00 : f32
    %60 = vector.broadcast %cst_24 : f32 to vector<32x256xf32>
    %c0_25 = arith.constant 0 : index
    %c768 = arith.constant 768 : index
    %61 = vector.load %arg2[%c0_25, %c768] : memref<32x3072xbf16, #tpu.memory_space<vmem>>, vector<32x256xbf16>
    %cst_26 = arith.constant dense<0.000000e+00> : vector<32x256xf32>
    %62 = tpu.matmul %31, %61, %cst_26 {dimension_numbers = #tpu.dot_dimension_numbers<[1], [0], [0], [1], [0, 0, 1, 1], [], []>} : vector<32x32xbf16>, vector<32x256xbf16>, vector<32x256xf32> -> vector<32x256xf32>
    %63 = arith.addf %60, %62 : vector<32x256xf32>
    %c0_27 = arith.constant 0 : index
    %c1024 = arith.constant 1024 : index
    %64 = vector.load %arg2[%c0_27, %c1024] : memref<32x3072xbf16, #tpu.memory_space<vmem>>, vector<32x256xbf16>
    %cst_28 = arith.constant dense<0.000000e+00> : vector<32x256xf32>
    %65 = tpu.matmul %35, %64, %cst_28 {dimension_numbers = #tpu.dot_dimension_numbers<[1], [0], [0], [1], [0, 0, 1, 1], [], []>} : vector<32x32xbf16>, vector<32x256xbf16>, vector<32x256xf32> -> vector<32x256xf32>
    %66 = arith.addf %63, %65 : vector<32x256xf32>
    %c0_29 = arith.constant 0 : index
    %c1280 = arith.constant 1280 : index
    %67 = vector.load %arg2[%c0_29, %c1280] : memref<32x3072xbf16, #tpu.memory_space<vmem>>, vector<32x256xbf16>
    %cst_30 = arith.constant dense<0.000000e+00> : vector<32x256xf32>
    %68 = tpu.matmul %51, %67, %cst_30 {dimension_numbers = #tpu.dot_dimension_numbers<[1], [0], [0], [1], [0, 0, 1, 1], [], []>} : vector<32x32xbf16>, vector<32x256xbf16>, vector<32x256xf32> -> vector<32x256xf32>
    %69 = arith.addf %66, %68 : vector<32x256xf32>
    %c30_i32 = arith.constant 30 : i32
    %70 = tpu.dynamic_rotate %0 by %c30_i32 dim 0 : vector<32x32xf32>, i32 -> vector<32x32xf32>
    %c2_i32 = arith.constant 2 : i32
    %71 = vector.broadcast %c2_i32 : i32 to vector<32x32xi32>
    %72 = arith.addi %17, %71 : vector<32x32xi32>
    %c0_i32_31 = arith.constant 0 : i32
    %73 = vector.broadcast %c0_i32_31 : i32 to vector<32x32xi32>
    %74 = arith.cmpi sge, %72, %73 : vector<32x32xi32>
    %c2_i32_32 = arith.constant 2 : i32
    %75 = vector.broadcast %c2_i32_32 : i32 to vector<32x32xi32>
    %76 = arith.addi %17, %75 : vector<32x32xi32>
    %c16_i32_33 = arith.constant 16 : i32
    %77 = vector.broadcast %c16_i32_33 : i32 to vector<32x32xi32>
    %78 = arith.cmpi slt, %76, %77 : vector<32x32xi32>
    %79 = arith.andi %74, %78 : vector<32x32xi1>
    %cst_34 = arith.constant 0.000000e+00 : f32
    %80 = vector.broadcast %cst_34 : f32 to vector<32x32xf32>
    %81 = arith.select %79, %70, %80 : vector<32x32xi1>, vector<32x32xf32>
    %82 = arith.truncf %81 : vector<32x32xf32> to vector<32x32xbf16>
    %c0_35 = arith.constant 0 : index
    %c1536 = arith.constant 1536 : index
    %83 = vector.load %arg2[%c0_35, %c1536] : memref<32x3072xbf16, #tpu.memory_space<vmem>>, vector<32x256xbf16>
    %cst_36 = arith.constant dense<0.000000e+00> : vector<32x256xf32>
    %84 = tpu.matmul %82, %83, %cst_36 {dimension_numbers = #tpu.dot_dimension_numbers<[1], [0], [0], [1], [0, 0, 1, 1], [], []>} : vector<32x32xbf16>, vector<32x256xbf16>, vector<32x256xf32> -> vector<32x256xf32>
    %85 = arith.addf %69, %84 : vector<32x256xf32>
    %c0_37 = arith.constant 0 : index
    %c256_38 = arith.constant 256 : index
    %86 = vector.load %arg3[%c0_37, %c256_38] : memref<1x768xf32, #tpu.memory_space<vmem>>, vector<1x256xf32>
    %87 = vector.broadcast %86 : vector<1x256xf32> to vector<32x256xf32>
    %88 = arith.addf %85, %87 : vector<32x256xf32>
    %cst_39 = arith.constant 0.000000e+00 : f32
    %89 = vector.broadcast %cst_39 : f32 to vector<32x256xf32>
    %90 = arith.maximumf %88, %89 : vector<32x256xf32>
    %cst_40 = arith.constant 0.000000e+00 : f32
    %91 = vector.broadcast %cst_40 : f32 to vector<32x256xf32>
    %c2_i32_41 = arith.constant 2 : i32
    %92 = tpu.dynamic_rotate %0 by %c2_i32_41 dim 0 : vector<32x32xf32>, i32 -> vector<32x32xf32>
    %c-2_i32 = arith.constant -2 : i32
    %93 = vector.broadcast %c-2_i32 : i32 to vector<32x32xi32>
    %94 = arith.addi %17, %93 : vector<32x32xi32>
    %c0_i32_42 = arith.constant 0 : i32
    %95 = vector.broadcast %c0_i32_42 : i32 to vector<32x32xi32>
    %96 = arith.cmpi sge, %94, %95 : vector<32x32xi32>
    %c-2_i32_43 = arith.constant -2 : i32
    %97 = vector.broadcast %c-2_i32_43 : i32 to vector<32x32xi32>
    %98 = arith.addi %17, %97 : vector<32x32xi32>
    %c16_i32_44 = arith.constant 16 : i32
    %99 = vector.broadcast %c16_i32_44 : i32 to vector<32x32xi32>
    %100 = arith.cmpi slt, %98, %99 : vector<32x32xi32>
    %101 = arith.andi %96, %100 : vector<32x32xi1>
    %cst_45 = arith.constant 0.000000e+00 : f32
    %102 = vector.broadcast %cst_45 : f32 to vector<32x32xf32>
    %103 = arith.select %101, %92, %102 : vector<32x32xi1>, vector<32x32xf32>
    %104 = arith.truncf %103 : vector<32x32xf32> to vector<32x32xbf16>
    %c0_46 = arith.constant 0 : index
    %c1792 = arith.constant 1792 : index
    %105 = vector.load %arg2[%c0_46, %c1792] : memref<32x3072xbf16, #tpu.memory_space<vmem>>, vector<32x256xbf16>
    %cst_47 = arith.constant dense<0.000000e+00> : vector<32x256xf32>
    %106 = tpu.matmul %104, %105, %cst_47 {dimension_numbers = #tpu.dot_dimension_numbers<[1], [0], [0], [1], [0, 0, 1, 1], [], []>} : vector<32x32xbf16>, vector<32x256xbf16>, vector<32x256xf32> -> vector<32x256xf32>
    %107 = arith.addf %91, %106 : vector<32x256xf32>
    %c0_48 = arith.constant 0 : index
    %c2048 = arith.constant 2048 : index
    %108 = vector.load %arg2[%c0_48, %c2048] : memref<32x3072xbf16, #tpu.memory_space<vmem>>, vector<32x256xbf16>
    %cst_49 = arith.constant dense<0.000000e+00> : vector<32x256xf32>
    %109 = tpu.matmul %31, %108, %cst_49 {dimension_numbers = #tpu.dot_dimension_numbers<[1], [0], [0], [1], [0, 0, 1, 1], [], []>} : vector<32x32xbf16>, vector<32x256xbf16>, vector<32x256xf32> -> vector<32x256xf32>
    %110 = arith.addf %107, %109 : vector<32x256xf32>
    %c0_50 = arith.constant 0 : index
    %c2304 = arith.constant 2304 : index
    %111 = vector.load %arg2[%c0_50, %c2304] : memref<32x3072xbf16, #tpu.memory_space<vmem>>, vector<32x256xbf16>
    %cst_51 = arith.constant dense<0.000000e+00> : vector<32x256xf32>
    %112 = tpu.matmul %35, %111, %cst_51 {dimension_numbers = #tpu.dot_dimension_numbers<[1], [0], [0], [1], [0, 0, 1, 1], [], []>} : vector<32x32xbf16>, vector<32x256xbf16>, vector<32x256xf32> -> vector<32x256xf32>
    %113 = arith.addf %110, %112 : vector<32x256xf32>
    %c0_52 = arith.constant 0 : index
    %c2560 = arith.constant 2560 : index
    %114 = vector.load %arg2[%c0_52, %c2560] : memref<32x3072xbf16, #tpu.memory_space<vmem>>, vector<32x256xbf16>
    %cst_53 = arith.constant dense<0.000000e+00> : vector<32x256xf32>
    %115 = tpu.matmul %51, %114, %cst_53 {dimension_numbers = #tpu.dot_dimension_numbers<[1], [0], [0], [1], [0, 0, 1, 1], [], []>} : vector<32x32xbf16>, vector<32x256xbf16>, vector<32x256xf32> -> vector<32x256xf32>
    %116 = arith.addf %113, %115 : vector<32x256xf32>
    %c0_54 = arith.constant 0 : index
    %c2816 = arith.constant 2816 : index
    %117 = vector.load %arg2[%c0_54, %c2816] : memref<32x3072xbf16, #tpu.memory_space<vmem>>, vector<32x256xbf16>
    %cst_55 = arith.constant dense<0.000000e+00> : vector<32x256xf32>
    %118 = tpu.matmul %82, %117, %cst_55 {dimension_numbers = #tpu.dot_dimension_numbers<[1], [0], [0], [1], [0, 0, 1, 1], [], []>} : vector<32x32xbf16>, vector<32x256xbf16>, vector<32x256xf32> -> vector<32x256xf32>
    %119 = arith.addf %116, %118 : vector<32x256xf32>
    %c0_56 = arith.constant 0 : index
    %c512_57 = arith.constant 512 : index
    %120 = vector.load %arg3[%c0_56, %c512_57] : memref<1x768xf32, #tpu.memory_space<vmem>>, vector<1x256xf32>
    %121 = vector.broadcast %120 : vector<1x256xf32> to vector<32x256xf32>
    %122 = arith.addf %119, %121 : vector<32x256xf32>
    %cst_58 = arith.constant 0.000000e+00 : f32
    %123 = vector.broadcast %cst_58 : f32 to vector<32x256xf32>
    %124 = arith.maximumf %122, %123 : vector<32x256xf32>
    %125 = tpu.concatenate %59, %90, %124 in 1 : vector<32x256xf32>, vector<32x256xf32>, vector<32x256xf32> -> vector<32x768xf32>
    %126 = vector.extract_strided_slice %125 {offsets = [0, 0], sizes = [16, 768], strides = [1, 1]} : vector<32x768xf32> to vector<16x768xf32>
    %cst_59 = arith.constant dense<0xFF800000> : vector<768xf32>
    %127 = vector.multi_reduction <maximumf>, %126, %cst_59 [0] : vector<16x768xf32> to vector<768xf32>
    %128 = vector.shape_cast %127 : vector<768xf32> to vector<1x768xf32>
    %129 = vector.extract_strided_slice %125 {offsets = [16, 0], sizes = [16, 768], strides = [1, 1]} : vector<32x768xf32> to vector<16x768xf32>
    %cst_60 = arith.constant dense<0xFF800000> : vector<768xf32>
    %130 = vector.multi_reduction <maximumf>, %129, %cst_60 [0] : vector<16x768xf32> to vector<768xf32>
    %131 = vector.shape_cast %130 : vector<768xf32> to vector<1x768xf32>
    %132 = tpu.concatenate %128, %131 in 0 : vector<1x768xf32>, vector<1x768xf32> -> vector<2x768xf32>
    %c0_61 = arith.constant 0 : index
    %c0_62 = arith.constant 0 : index
    %133 = vector.load %arg4[%c0_61, %c0_62] : memref<2x768xf32, #tpu.memory_space<vmem>>, vector<2x768xf32>
    tpu.vector_store %arg4[%c0_61, %c0_62], %132 {strides = array<i32>} : memref<2x768xf32, #tpu.memory_space<vmem>>, vector<2x768xf32>,
    return
  }
  func.func @transform_0(%arg0: i32) -> (i32, i32) {
    %c0_i32 = arith.constant 0 : i32
    %c0_i32_0 = arith.constant 0 : i32
    %c0_i32_1 = arith.constant 0 : i32
    return %c0_i32, %c0_i32_0 : i32, i32
  }
  func.func @transform_1(%arg0: i32) -> (i32, i32) {
    %c0_i32 = arith.constant 0 : i32
    %c0_i32_0 = arith.constant 0 : i32
    %c0_i32_1 = arith.constant 0 : i32
    return %c0_i32, %c0_i32_0 : i32, i32
  }
  func.func @transform_2(%arg0: i32) -> (i32, i32) {
    %c0_i32 = arith.constant 0 : i32
    %c0_i32_0 = arith.constant 0 : i32
    %c0_i32_1 = arith.constant 0 : i32
    return %c0_i32, %c0_i32_0 : i32, i32
  }
  func.func @transform_3(%arg0: i32) -> (i32, i32) {
    %c0_i32 = arith.constant 0 : i32
    %c0_i32_0 = arith.constant 0 : i32
    %c0_i32_1 = arith.constant 0 : i32
    return %c0_i32, %c0_i32_0 : i32, i32
  }
}

</mosaic_0001>

<llo_original>
// kernel: textcnn_forward.1
$region0: #{textcnn_forward.1}
  #allocation0 [shape = 'u32[]', space=smem, size = 0x4, offset = 0x4, fixed_abs, tag = 'smem constant byte address 0x4 - core index']
  #allocation1 [shape = 'u32[144,128]{1,0:T(1,128)}', space=vmem, size = 0x12000, scoped, tag = 'internal scratch']
  %s0 = inlined_call_operand.hbm [shape: f32[32,32], index: 0, kind: input, shape index: {}]
  %s1 = inlined_call_operand.hbm [shape: bf16[32,3072], index: 1, kind: input, shape index: {}]
  %s2 = inlined_call_operand.hbm [shape: f32[1,768], index: 2, kind: input, shape index: {}]
  %s3 = inlined_call_operand.hbm [shape: f32[2,768], index: 3, kind: output, shape index: {}]
  %s4 = sld [smem:[#allocation0]]
  $region34: #{textcnn_forward.1} parent=0
    _
  %s6 = ssub.s32 1, %s4
  %s7 = scalar_select 0, %s6, %s4
  $region1: #{textcnn_forward.1} parent=0
    #allocation2 [shape = 'u8[16384]{0}', space=vmem, size = 0x4000, scoped, tag = 'input window, operand 0, single buffered']
    #allocation3 [shape = 's32[1]{0}', space=sflag, size = 0x4, scoped, tag = 'scoped memory for textcnn_forward.1']
    #allocation4 [shape = 's32[1]{0}', space=sflag, size = 0x4, scoped, tag = 'scoped memory for textcnn_forward.1']
    #allocation5 [shape = 'u8[196608]{0}', space=vmem, size = 0x30000, scoped, tag = 'input window, operand 1, single buffered']
    #allocation6 [shape = 's32[1]{0}', space=sflag, size = 0x4, scoped, tag = 'scoped memory for textcnn_forward.1']
    #allocation7 [shape = 'u8[3072]{0}', space=vmem, size = 0xc00, scoped, tag = 'input window, operand 2, single buffered']
    #allocation8 [shape = 'u8[6144]{0}', space=vmem, size = 0x1800, scoped, tag = 'output window, operand 0, single buffered']
    %8 = vsyncpa [#allocation3], 0
    %9 = vsyncpa [#allocation6], 0
    %10 = vsyncpa [#allocation4], 0
    // Predicated region
    $region2: #{textcnn_forward.1} parent=1 // pred_check
      _
    $region3: #{textcnn_forward.1} parent=1 // pred_check_branch
      %12 = sbr.rel (0) target = $region5
    $region4: #{textcnn_forward.1} parent=1 // pred_region
      %s14 = ssub.s32 512, 512
      %15 = vsyncadd [#allocation3], %s14
      %s16 = sshll.u32 [#allocation2], 4
      %s17 = int_to_ptr.vmem [resolvable:$true] %s16
      %22 = dma.hbm_to_vmem [thread:$0]  %s0, 512, %s17, [#allocation3], 128, 128, 8
    $region5: #{textcnn_forward.1} parent=1 // pred_fallthru
      _
    // Predicated region
    $region6: #{textcnn_forward.1} parent=1 // pred_check
      _
    $region7: #{textcnn_forward.1} parent=1 // pred_check_branch
      %24 = sbr.rel (0) target = $region9
    $region8: #{textcnn_forward.1} parent=1 // pred_region
      %s26 = ssub.s32 6144, 6144
      %27 = vsyncadd [#allocation6], %s26
      %s28 = sshll.u32 [#allocation5], 4
      %s29 = int_to_ptr.vmem [resolvable:$true] %s28
      %34 = dma.hbm_to_vmem [thread:$0]  %s1, 6144, %s29, [#allocation6], 1536, 1536, 96
    $region9: #{textcnn_forward.1} parent=1 // pred_fallthru
      _
    // Predicated region
    $region10: #{textcnn_forward.1} parent=1 // pred_check
      _
    $region11: #{textcnn_forward.1} parent=1 // pred_check_branch
      %36 = sbr.rel (0) target = $region13
    $region12: #{textcnn_forward.1} parent=1 // pred_region
      %s38 = ssub.s32 96, 96
      %39 = vsyncadd [#allocation6], %s38
      %s41 = sshll.u32 [#allocation7], 4
      %s42 = int_to_ptr.vmem [resolvable:$true] %s41
      %44 = dma.hbm_to_vmem [thread:$0]  %s2, 96, %s42, [#allocation6]
    $region13: #{textcnn_forward.1} parent=1 // pred_fallthru
      _
    // Predicated region
    $region14: #{textcnn_forward.1} parent=1 // pred_check
      _
    $region15: #{textcnn_forward.1} parent=1 // pred_check_branch
      %46 = sbr.rel (0) target = $region17
    $region16: #{textcnn_forward.1} parent=1 // pred_region
      %47 = dma.done [#allocation3], 512
    $region17: #{textcnn_forward.1} parent=1 // pred_fallthru
      _
    // Predicated region
    $region18: #{textcnn_forward.1} parent=1 // pred_check
      _
    $region19: #{textcnn_forward.1} parent=1 // pred_check_branch
      %49 = sbr.rel (0) target = $region21
    $region20: #{textcnn_forward.1} parent=1 // pred_region
      %50 = dma.done [#allocation6], 6144
    $region21: #{textcnn_forward.1} parent=1 // pred_fallthru
      _
    // Predicated region
    $region22: #{textcnn_forward.1} parent=1 // pred_check
      _
    $region23: #{textcnn_forward.1} parent=1 // pred_check_branch
      %52 = sbr.rel (0) target = $region25
    $region24: #{textcnn_forward.1} parent=1 // pred_region
      %53 = dma.done [#allocation6], 96
    $region25: #{textcnn_forward.1} parent=1 // pred_fallthru
      _
    %v55 = vld [vmem:[#allocation2] sm:$0xff]
    %v56 = vld [vmem:[#allocation2 + $0x8] sm:$0xff]
    %v57 = vld [vmem:[#allocation2 + $0x10] sm:$0xff]
    %v58 = vld [vmem:[#allocation2 + $0x18] sm:$0xff]
    %v59 = vlaneseq
    %v60 = vshrl.u32 %v59, 7
    %v61 = vadd.s32 %v60, 8
    %v62 = vadd.s32 %v60, 16
    %v63 = vadd.s32 %v60, 24
    %vm64 = vcmp.lt.s32.totalorder %v60, 0
    %v65 = vsub.s32 0, %v60
    %v66 = vsel %vm64, %v65, %v60
    %v67 = vshrl.u32 %v66, 4
    %v68 = vand.u32 %v66, 15
    %v69 = vsub.s32 0, %v68
    %v70 = vsel %vm64, %v69, %v68
    %vm71 = vcmp.lt.s32.totalorder %v61, 0
    %v72 = vsub.s32 0, %v61
    %v73 = vsel %vm71, %v72, %v61
    %v74 = vshrl.u32 %v73, 4
    %v75 = vand.u32 %v73, 15
    %v76 = vsub.s32 0, %v75
    %v77 = vsel %vm71, %v76, %v75
    %vm78 = vcmp.lt.s32.totalorder %v62, 0
    %v79 = vsub.s32 0, %v62
    %v80 = vsel %vm78, %v79, %v62
    %v81 = vshrl.u32 %v80, 4
    %v82 = vand.u32 %v80, 15
    %v83 = vsub.s32 0, %v82
    %v84 = vsel %vm78, %v83, %v82
    %vm85 = vcmp.lt.s32.totalorder %v63, 0
    %v86 = vsub.s32 0, %v63
    %v87 = vsel %vm85, %v86, %v63
    %v88 = vshrl.u32 %v87, 4
    %v89 = vand.u32 %v87, 15
    %v90 = vsub.s32 0, %v89
    %v91 = vsel %vm85, %v90, %v89
    %vm92 = vcmp.ne.s32.totalorder %v70, 0
    %vm93 = vcmp.ne.s32.totalorder %v77, 0
    %vm94 = vcmp.ne.s32.totalorder %v84, 0
    %vm95 = vcmp.ne.s32.totalorder %v91, 0
    %vm96 = vcmp.lt.s32.totalorder %v70, 0
    %vm97 = vcmp.lt.s32.totalorder %v77, 0
    %vm98 = vcmp.lt.s32.totalorder %v84, 0
    %vm99 = vcmp.lt.s32.totalorder %v91, 0
    %vm100 = vmand %vm96, %vm92
    %vm101 = vmand %vm97, %vm93
    %vm102 = vmand %vm98, %vm94
    %vm103 = vmand %vm99, %vm95
    %v104 = vadd.s32 %v70, 16
    %v105 = vadd.s32 %v77, 16
    %v106 = vadd.s32 %v84, 16
    %v107 = vadd.s32 %v91, 16
    %v108 = vsel %vm100, %v104, %v70
    %v109 = vsel %vm101, %v105, %v77
    %v110 = vsel %vm102, %v106, %v84
    %v111 = vsel %vm103, %v107, %v91
    %v112 = vrot.slane %v55, 7
    %v113 = vrot.slane %v56, 7
    %v114 = vrot.slane %v57, 7
    %v115 = vrot.slane %v58, 7
    %vm116 = vcmp.lt.s32.totalorder %v60, 1
    %v117 = vsel %vm116, %v114, %v115
    %v118 = vsel %vm116, %v113, %v114
    %v119 = vsel %vm116, %v112, %v113
    %v120 = vsel %vm116, %v115, %v112
    %v121 = vadd.s32 %v108, 4294967295
    %v122 = vadd.s32 %v109, 4294967295
    %v123 = vadd.s32 %v110, 4294967295
    %v124 = vadd.s32 %v111, 4294967295
    %vm125 = vcmp.ge.s32.totalorder %v121, 0
    %vm126 = vcmp.ge.s32.totalorder %v122, 0
    %vm127 = vcmp.ge.s32.totalorder %v123, 0
    %vm128 = vcmp.ge.s32.totalorder %v124, 0
    %vm129 = vcmp.lt.s32.totalorder %v121, 16
    %vm130 = vcmp.lt.s32.totalorder %v122, 16
    %vm131 = vcmp.lt.s32.totalorder %v123, 16
    %vm132 = vcmp.lt.s32.totalorder %v124, 16
    %vm133 = vmand %vm125, %vm129
    %vm134 = vmand %vm126, %vm130
    %vm135 = vmand %vm127, %vm131
    %vm136 = vmand %vm128, %vm132
    %v137 = vsel %vm133, %v120, 0.0
    %v138 = vsel %vm134, %v119, 0.0
    %v139 = vsel %vm135, %v118, 0.0
    %v140 = vsel %vm136, %v117, 0.0
    %v141 = vpack.c.bf16 %v138, %v137
    %v142 = vpack.c.bf16 %v140, %v139
    %v143 = vld [vmem:[#allocation5] sm:$0xff]
    %v144 = vld [vmem:[#allocation5 + $0x60] sm:$0xff]
    %v145 = vld [vmem:[#allocation5 + $0xc0] sm:$0xff]
    %v146 = vld [vmem:[#allocation5 + $0x120] sm:$0xff]
    %v147 = vpack.c.bf16 %v56, %v55
    %v148 = vpack.c.bf16 %v58, %v57
    %v149 = vld [vmem:[#allocation5 + $0x8] sm:$0xff]
    %v150 = vld [vmem:[#allocation5 + $0x68] sm:$0xff]
    %v151 = vld [vmem:[#allocation5 + $0xc8] sm:$0xff]
    %v152 = vld [vmem:[#allocation5 + $0x128] sm:$0xff]
    %v157 = vunpack.c.l.b16 %v149
    %v158 = vunpack.c.h.b16 %v149
    %v159 = vunpack.c.l.b16 %v150
    %v160 = vunpack.c.h.b16 %v150
    %v161 = vunpack.c.l.b16 %v151
    %v162 = vunpack.c.h.b16 %v151
    %v163 = vunpack.c.l.b16 %v152
    %v164 = vunpack.c.h.b16 %v152
    %v165 = vpack.c.b16 %v159, %v157
    %v166 = vpack.c.b16 %v160, %v158
    %v167 = vpack.c.b16 %v163, %v161
    %v168 = vpack.c.b16 %v164, %v162
    %vm173 = vcmask 261120
    %v175 = vsel %vm173, %v147, 0
    %v178 = vsel %vm173, %v148, 0
    %180 = vmatprep.subr.bf16.mxu0 0
    %181 = vmatpush1.bf16.msra.mxu0 0
    %182 = vmatprep.subr.bf16.mxu0 0
    %183 = vmatpush1.bf16.msra.mxu0 0
    %184 = vmatprep.subr.bf16.mxu0 0
    %185 = vmatpush1.bf16.msra.mxu0 0
    %186 = vmatprep.subr.bf16.mxu0 0
    %187 = vmatpush1.bf16.msra.mxu0 0
    %188 = vmatprep.subr.bf16.mxu0 0
    %189 = vmatpush1.bf16.msra.mxu0 0
    %190 = vmatprep.subr.bf16.mxu0 0
    %191 = vmatpush1.bf16.msra.mxu0 0
    %192 = vmatprep.subr.bf16.mxu0 %v168
    %193 = vmatpush1.bf16.msra.mxu0 %v167
    %194 = vmatprep.subr.bf16.mxu0 %v166
    %195 = vmatpush1.bf16.msra.mxu0 %v165
    %196 = vmatprep.subr.bf16.mxu0 0
    %197 = vmatpush2.bf16.msra.mxu0 0
    %198 = vmatprep.subr.bf16.mxu0 0
    %199 = vmatpush2.bf16.msra.mxu0 0
    %200 = vmatprep.subr.bf16.mxu0 0
    %201 = vmatpush2.bf16.msra.mxu0 0
    %202 = vmatprep.subr.bf16.mxu0 0
    %203 = vmatpush2.bf16.msra.mxu0 0
    %204 = vmatprep.subr.bf16.mxu0 0
    %205 = vmatpush2.bf16.msra.mxu0 0
    %206 = vmatprep.subr.bf16.mxu0 0
    %207 = vmatpush2.bf16.msra.mxu0 0
    %208 = vmatprep.subr.bf16.mxu0 0
    %209 = vmatpush2.bf16.msra.mxu0 0
    %210 = vmatprep.subr.bf16.mxu0 0
    %211 = vmatpush2.bf16.msra.mxu0 0
    %212 = vmatprep.mubr.bf16.mxu0 0
    %213 = vmatmul.mubr.bf16.gmra.mxu0 %v175
    %v214 = vpop.f32.mrf.mxu0
    %v215 = vadd.f32 0.0, %v214
    %v216 = vpop.f32.mrf.mxu0
    %v217 = vadd.f32 0.0, %v216
    %v218 = vpop.f32.mrf.mxu0
    %v219 = vadd.f32 0.0, %v218
    %v220 = vpop.f32.mrf.mxu0
    %v221 = vadd.f32 0.0, %v220
    %222 = vmatprep.mubr.bf16.mxu0 0
    %223 = vmatmul.mubr.bf16.gmra.mxu0 %v178
    %v224 = vpop.f32.mrf.mxu0
    %v225 = vadd.f32 0.0, %v224
    %v226 = vpop.f32.mrf.mxu0
    %v227 = vadd.f32 0.0, %v226
    %v228 = vpop.f32.mrf.mxu0
    %v229 = vadd.f32 0.0, %v228
    %v230 = vpop.f32.mrf.mxu0
    %v231 = vadd.f32 0.0, %v230
    %232 = vdwg.mxu0
    %v237 = vunpack.c.l.b16 %v143
    %v238 = vunpack.c.h.b16 %v143
    %v239 = vunpack.c.l.b16 %v144
    %v240 = vunpack.c.h.b16 %v144
    %v241 = vunpack.c.l.b16 %v145
    %v242 = vunpack.c.h.b16 %v145
    %v243 = vunpack.c.l.b16 %v146
    %v244 = vunpack.c.h.b16 %v146
    %v245 = vpack.c.b16 %v239, %v237
    %v246 = vpack.c.b16 %v240, %v238
    %v247 = vpack.c.b16 %v243, %v241
    %v248 = vpack.c.b16 %v244, %v242
    %v254 = vsel %vm173, %v141, 0
    %v257 = vsel %vm173, %v142, 0
    %259 = vmatprep.subr.bf16.mxu0 0
    %260 = vmatpush1.bf16.msra.mxu0 0
    %261 = vmatprep.subr.bf16.mxu0 0
    %262 = vmatpush1.bf16.msra.mxu0 0
    %263 = vmatprep.subr.bf16.mxu0 0
    %264 = vmatpush1.bf16.msra.mxu0 0
    %265 = vmatprep.subr.bf16.mxu0 0
    %266 = vmatpush1.bf16.msra.mxu0 0
    %267 = vmatprep.subr.bf16.mxu0 0
    %268 = vmatpush1.bf16.msra.mxu0 0
    %269 = vmatprep.subr.bf16.mxu0 0
    %270 = vmatpush1.bf16.msra.mxu0 0
    %271 = vmatprep.subr.bf16.mxu0 %v248
    %272 = vmatpush1.bf16.msra.mxu0 %v247
    %273 = vmatprep.subr.bf16.mxu0 %v246
    %274 = vmatpush1.bf16.msra.mxu0 %v245
    %275 = vmatprep.subr.bf16.mxu0 0
    %276 = vmatpush2.bf16.msra.mxu0 0
    %277 = vmatprep.subr.bf16.mxu0 0
    %278 = vmatpush2.bf16.msra.mxu0 0
    %279 = vmatprep.subr.bf16.mxu0 0
    %280 = vmatpush2.bf16.msra.mxu0 0
    %281 = vmatprep.subr.bf16.mxu0 0
    %282 = vmatpush2.bf16.msra.mxu0 0
    %283 = vmatprep.subr.bf16.mxu0 0
    %284 = vmatpush2.bf16.msra.mxu0 0
    %285 = vmatprep.subr.bf16.mxu0 0
    %286 = vmatpush2.bf16.msra.mxu0 0
    %287 = vmatprep.subr.bf16.mxu0 0
    %288 = vmatpush2.bf16.msra.mxu0 0
    %289 = vmatprep.subr.bf16.mxu0 0
    %290 = vmatpush2.bf16.msra.mxu0 0
    %291 = vmatprep.mubr.bf16.mxu0 0
    %292 = vmatmul.mubr.bf16.gmra.mxu0 %v254
    %v293 = vpop.f32.mrf.mxu0
    %v294 = vadd.f32 %v215, %v293
    %v295 = vpop.f32.mrf.mxu0
    %v296 = vadd.f32 %v217, %v295
    %v297 = vpop.f32.mrf.mxu0
    %v298 = vadd.f32 %v219, %v297
    %v299 = vpop.f32.mrf.mxu0
    %v300 = vadd.f32 %v221, %v299
    %301 = vmatprep.mubr.bf16.mxu0 0
    %302 = vmatmul.mubr.bf16.gmra.mxu0 %v257
    %v303 = vpop.f32.mrf.mxu0
    %v304 = vadd.f32 %v225, %v303
    %v305 = vpop.f32.mrf.mxu0
    %v306 = vadd.f32 %v227, %v305
    %v307 = vpop.f32.mrf.mxu0
    %v308 = vadd.f32 %v229, %v307
    %v309 = vpop.f32.mrf.mxu0
    %v310 = vadd.f32 %v231, %v309
    %311 = vdwg.mxu0
    %v312 = vrot.slane %v55, 1
    %v313 = vrot.slane %v56, 1
    %v314 = vrot.slane %v57, 1
    %v315 = vrot.slane %v58, 1
    %vm316 = vcmp.lt.s32.totalorder %v60, 7
    %v317 = vsel %vm316, %v314, %v315
    %v318 = vsel %vm316, %v313, %v314
    %v319 = vsel %vm316, %v312, %v313
    %v320 = vsel %vm316, %v315, %v312
    %v321 = vadd.s32 %v108, 1
    %v322 = vadd.s32 %v109, 1
    %v323 = vadd.s32 %v110, 1
    %v324 = vadd.s32 %v111, 1
    %vm325 = vcmp.ge.s32.totalorder %v321, 0
    %vm326 = vcmp.ge.s32.totalorder %v322, 0
    %vm327 = vcmp.ge.s32.totalorder %v323, 0
    %vm328 = vcmp.ge.s32.totalorder %v324, 0
    %vm329 = vcmp.lt.s32.totalorder %v321, 16
    %vm330 = vcmp.lt.s32.totalorder %v322, 16
    %vm331 = vcmp.lt.s32.totalorder %v323, 16
    %vm332 = vcmp.lt.s32.totalorder %v324, 16
    %vm333 = vmand %vm325, %vm329
    %vm334 = vmand %vm326, %vm330
    %vm335 = vmand %vm327, %vm331
    %vm336 = vmand %vm328, %vm332
    %v337 = vsel %vm333, %v319, 0.0
    %v338 = vsel %vm334, %v318, 0.0
    %v339 = vsel %vm335, %v317, 0.0
    %v340 = vsel %vm336, %v320, 0.0
    %v341 = vpack.c.bf16 %v338, %v337
    %v342 = vpack.c.bf16 %v340, %v339
    %v343 = vld [vmem:[#allocation5 + $0x10] sm:$0xff]
    %v344 = vld [vmem:[#allocation5 + $0x70] sm:$0xff]
    %v345 = vld [vmem:[#allocation5 + $0xd0] sm:$0xff]
    %v346 = vld [vmem:[#allocation5 + $0x130] sm:$0xff]
    %v351 = vunpack.c.l.b16 %v343
    %v352 = vunpack.c.h.b16 %v343
    %v353 = vunpack.c.l.b16 %v344
    %v354 = vunpack.c.h.b16 %v344
    %v355 = vunpack.c.l.b16 %v345
    %v356 = vunpack.c.h.b16 %v345
    %v357 = vunpack.c.l.b16 %v346
    %v358 = vunpack.c.h.b16 %v346
    %v359 = vpack.c.b16 %v353, %v351
    %v360 = vpack.c.b16 %v354, %v352
    %v361 = vpack.c.b16 %v357, %v355
    %v362 = vpack.c.b16 %v358, %v356
    %v368 = vsel %vm173, %v341, 0
    %v371 = vsel %vm173, %v342, 0
    %373 = vmatprep.subr.bf16.mxu0 0
    %374 = vmatpush1.bf16.msra.mxu0 0
    %375 = vmatprep.subr.bf16.mxu0 0
    %376 = vmatpush1.bf16.msra.mxu0 0
    %377 = vmatprep.subr.bf16.mxu0 0
    %378 = vmatpush1.bf16.msra.mxu0 0
    %379 = vmatprep.subr.bf16.mxu0 0
    %380 = vmatpush1.bf16.msra.mxu0 0
    %381 = vmatprep.subr.bf16.mxu0 0
    %382 = vmatpush1.bf16.msra.mxu0 0
    %383 = vmatprep.subr.bf16.mxu0 0
    %384 = vmatpush1.bf16.msra.mxu0 0
    %385 = vmatprep.subr.bf16.mxu0 %v362
    %386 = vmatpush1.bf16.msra.mxu0 %v361
    %387 = vmatprep.subr.bf16.mxu0 %v360
    %388 = vmatpush1.bf16.msra.mxu0 %v359
    %389 = vmatprep.subr.bf16.mxu0 0
    %390 = vmatpush2.bf16.msra.mxu0 0
    %391 = vmatprep.subr.bf16.mxu0 0
    %392 = vmatpush2.bf16.msra.mxu0 0
    %393 = vmatprep.subr.bf16.mxu0 0
    %394 = vmatpush2.bf16.msra.mxu0 0
    %395 = vmatprep.subr.bf16.mxu0 0
    %396 = vmatpush2.bf16.msra.mxu0 0
    %397 = vmatprep.subr.bf16.mxu0 0
    %398 = vmatpush2.bf16.msra.mxu0 0
    %399 = vmatprep.subr.bf16.mxu0 0
    %400 = vmatpush2.bf16.msra.mxu0 0
    %401 = vmatprep.subr.bf16.mxu0 0
    %402 = vmatpush2.bf16.msra.mxu0 0
    %403 = vmatprep.subr.bf16.mxu0 0
    %404 = vmatpush2.bf16.msra.mxu0 0
    %405 = vmatprep.mubr.bf16.mxu0 0
    %406 = vmatmul.mubr.bf16.gmra.mxu0 %v368
    %v407 = vpop.f32.mrf.mxu0
    %v408 = vadd.f32 0.0, %v407
    %v409 = vpop.f32.mrf.mxu0
    %v410 = vadd.f32 0.0, %v409
    %v411 = vpop.f32.mrf.mxu0
    %v412 = vadd.f32 0.0, %v411
    %v413 = vpop.f32.mrf.mxu0
    %v414 = vadd.f32 0.0, %v413
    %415 = vmatprep.mubr.bf16.mxu0 0
    %416 = vmatmul.mubr.bf16.gmra.mxu0 %v371
    %v417 = vpop.f32.mrf.mxu0
    %v418 = vadd.f32 0.0, %v417
    %v419 = vpop.f32.mrf.mxu0
    %v420 = vadd.f32 0.0, %v419
    %v421 = vpop.f32.mrf.mxu0
    %v422 = vadd.f32 0.0, %v421
    %v423 = vpop.f32.mrf.mxu0
    %v424 = vadd.f32 0.0, %v423
    %425 = vdwg.mxu0
    %v426 = vadd.f32 %v294, %v408
    %v427 = vadd.f32 %v296, %v410
    %v428 = vadd.f32 %v298, %v412
    %v429 = vadd.f32 %v300, %v414
    %v430 = vadd.f32 %v304, %v418
    %v431 = vadd.f32 %v306, %v420
    %v432 = vadd.f32 %v308, %v422
    %v433 = vadd.f32 %v310, %v424
    %v434 = vld [vmem:[#allocation7] sm:$0x3]
    %v436 = vlaneseq
    %v437 = vshrl.u32 %v436, 7
    %v438 = vsub.s32 0, %v437
    %v439 = vrot.slane %v434, %v438
    %v440 = vlaneseq
    %v441 = vshrl.u32 %v440, 7
    %v442 = vsub.s32 1, %v441
    %v443 = vrot.slane %v434, %v442
    %v446 = vadd.f32 %v426, %v439
    %v447 = vadd.f32 %v427, %v443
    %v448 = vadd.f32 %v428, %v439
    %v449 = vadd.f32 %v429, %v443
    %v450 = vadd.f32 %v430, %v439
    %v451 = vadd.f32 %v431, %v443
    %v452 = vadd.f32 %v432, %v439
    %v453 = vadd.f32 %v433, %v443
    %v454 = vmax.f32 %v446, 0.0
    %v455 = vmax.f32 %v447, 0.0
    %v456 = vmax.f32 %v448, 0.0
    %v457 = vmax.f32 %v449, 0.0
    %v458 = vmax.f32 %v450, 0.0
    %v459 = vmax.f32 %v451, 0.0
    %v460 = vmax.f32 %v452, 0.0
    %v461 = vmax.f32 %v453, 0.0
    %v462 = vld [vmem:[#allocation5 + $0x18] sm:$0xff]
    %v463 = vld [vmem:[#allocation5 + $0x78] sm:$0xff]
    %v464 = vld [vmem:[#allocation5 + $0xd8] sm:$0xff]
    %v465 = vld [vmem:[#allocation5 + $0x138] sm:$0xff]
    %v466 = vld [vmem:[#allocation5 + $0x20] sm:$0xff]
    %v467 = vld [vmem:[#allocation5 + $0x80] sm:$0xff]
    %v468 = vld [vmem:[#allocation5 + $0xe0] sm:$0xff]
    %v469 = vld [vmem:[#allocation5 + $0x140] sm:$0xff]
    %v474 = vunpack.c.l.b16 %v466
    %v475 = vunpack.c.h.b16 %v466
    %v476 = vunpack.c.l.b16 %v467
    %v477 = vunpack.c.h.b16 %v467
    %v478 = vunpack.c.l.b16 %v468
    %v479 = vunpack.c.h.b16 %v468
    %v480 = vunpack.c.l.b16 %v469
    %v481 = vunpack.c.h.b16 %v469
    %v482 = vpack.c.b16 %v476, %v474
    %v483 = vpack.c.b16 %v477, %v475
    %v484 = vpack.c.b16 %v480, %v478
    %v485 = vpack.c.b16 %v481, %v479
    %490 = vmatprep.subr.bf16.mxu0 0
    %491 = vmatpush1.bf16.msra.mxu0 0
    %492 = vmatprep.subr.bf16.mxu0 0
    %493 = vmatpush1.bf16.msra.mxu0 0
    %494 = vmatprep.subr.bf16.mxu0 0
    %495 = vmatpush1.bf16.msra.mxu0 0
    %496 = vmatprep.subr.bf16.mxu0 0
    %497 = vmatpush1.bf16.msra.mxu0 0
    %498 = vmatprep.subr.bf16.mxu0 0
    %499 = vmatpush1.bf16.msra.mxu0 0
    %500 = vmatprep.subr.bf16.mxu0 0
    %501 = vmatpush1.bf16.msra.mxu0 0
    %502 = vmatprep.subr.bf16.mxu0 %v485
    %503 = vmatpush1.bf16.msra.mxu0 %v484
    %504 = vmatprep.subr.bf16.mxu0 %v483
    %505 = vmatpush1.bf16.msra.mxu0 %v482
    %506 = vmatprep.subr.bf16.mxu0 0
    %507 = vmatpush2.bf16.msra.mxu0 0
    %508 = vmatprep.subr.bf16.mxu0 0
    %509 = vmatpush2.bf16.msra.mxu0 0
    %510 = vmatprep.subr.bf16.mxu0 0
    %511 = vmatpush2.bf16.msra.mxu0 0
    %512 = vmatprep.subr.bf16.mxu0 0
    %513 = vmatpush2.bf16.msra.mxu0 0
    %514 = vmatprep.subr.bf16.mxu0 0
    %515 = vmatpush2.bf16.msra.mxu0 0
    %516 = vmatprep.subr.bf16.mxu0 0
    %517 = vmatpush2.bf16.msra.mxu0 0
    %518 = vmatprep.subr.bf16.mxu0 0
    %519 = vmatpush2.bf16.msra.mxu0 0
    %520 = vmatprep.subr.bf16.mxu0 0
    %521 = vmatpush2.bf16.msra.mxu0 0
    %522 = vmatprep.mubr.bf16.mxu0 0
    %523 = vmatmul.mubr.bf16.gmra.mxu0 %v175
    %v524 = vpop.f32.mrf.mxu0
    %v525 = vadd.f32 0.0, %v524
    %v526 = vpop.f32.mrf.mxu0
    %v527 = vadd.f32 0.0, %v526
    %v528 = vpop.f32.mrf.mxu0
    %v529 = vadd.f32 0.0, %v528
    %v530 = vpop.f32.mrf.mxu0
    %v531 = vadd.f32 0.0, %v530
    %532 = vmatprep.mubr.bf16.mxu0 0
    %533 = vmatmul.mubr.bf16.gmra.mxu0 %v178
    %v534 = vpop.f32.mrf.mxu0
    %v535 = vadd.f32 0.0, %v534
    %v536 = vpop.f32.mrf.mxu0
    %v537 = vadd.f32 0.0, %v536
    %v538 = vpop.f32.mrf.mxu0
    %v539 = vadd.f32 0.0, %v538
    %v540 = vpop.f32.mrf.mxu0
    %v541 = vadd.f32 0.0, %v540
    %542 = vdwg.mxu0
    %v547 = vunpack.c.l.b16 %v462
    %v548 = vunpack.c.h.b16 %v462
    %v549 = vunpack.c.l.b16 %v463
    %v550 = vunpack.c.h.b16 %v463
    %v551 = vunpack.c.l.b16 %v464
    %v552 = vunpack.c.h.b16 %v464
    %v553 = vunpack.c.l.b16 %v465
    %v554 = vunpack.c.h.b16 %v465
    %v555 = vpack.c.b16 %v549, %v547
    %v556 = vpack.c.b16 %v550, %v548
    %v557 = vpack.c.b16 %v553, %v551
    %v558 = vpack.c.b16 %v554, %v552
    %563 = vmatprep.subr.bf16.mxu0 0
    %564 = vmatpush1.bf16.msra.mxu0 0
    %565 = vmatprep.subr.bf16.mxu0 0
    %566 = vmatpush1.bf16.msra.mxu0 0
    %567 = vmatprep.subr.bf16.mxu0 0
    %568 = vmatpush1.bf16.msra.mxu0 0
    %569 = vmatprep.subr.bf16.mxu0 0
    %570 = vmatpush1.bf16.msra.mxu0 0
    %571 = vmatprep.subr.bf16.mxu0 0
    %572 = vmatpush1.bf16.msra.mxu0 0
    %573 = vmatprep.subr.bf16.mxu0 0
    %574 = vmatpush1.bf16.msra.mxu0 0
    %575 = vmatprep.subr.bf16.mxu0 %v558
    %576 = vmatpush1.bf16.msra.mxu0 %v557
    %577 = vmatprep.subr.bf16.mxu0 %v556
    %578 = vmatpush1.bf16.msra.mxu0 %v555
    %579 = vmatprep.subr.bf16.mxu0 0
    %580 = vmatpush2.bf16.msra.mxu0 0
    %581 = vmatprep.subr.bf16.mxu0 0
    %582 = vmatpush2.bf16.msra.mxu0 0
    %583 = vmatprep.subr.bf16.mxu0 0
    %584 = vmatpush2.bf16.msra.mxu0 0
    %585 = vmatprep.subr.bf16.mxu0 0
    %586 = vmatpush2.bf16.msra.mxu0 0
    %587 = vmatprep.subr.bf16.mxu0 0
    %588 = vmatpush2.bf16.msra.mxu0 0
    %589 = vmatprep.subr.bf16.mxu0 0
    %590 = vmatpush2.bf16.msra.mxu0 0
    %591 = vmatprep.subr.bf16.mxu0 0
    %592 = vmatpush2.bf16.msra.mxu0 0
    %593 = vmatprep.subr.bf16.mxu0 0
    %594 = vmatpush2.bf16.msra.mxu0 0
    %595 = vmatprep.mubr.bf16.mxu0 0
    %596 = vmatmul.mubr.bf16.gmra.mxu0 %v254
    %v597 = vpop.f32.mrf.mxu0
    %v598 = vadd.f32 %v525, %v597
    %v599 = vpop.f32.mrf.mxu0
    %v600 = vadd.f32 %v527, %v599
    %v601 = vpop.f32.mrf.mxu0
    %v602 = vadd.f32 %v529, %v601
    %v603 = vpop.f32.mrf.mxu0
    %v604 = vadd.f32 %v531, %v603
    %605 = vmatprep.mubr.bf16.mxu0 0
    %606 = vmatmul.mubr.bf16.gmra.mxu0 %v257
    %v607 = vpop.f32.mrf.mxu0
    %v608 = vadd.f32 %v535, %v607
    %v609 = vpop.f32.mrf.mxu0
    %v610 = vadd.f32 %v537, %v609
    %v611 = vpop.f32.mrf.mxu0
    %v612 = vadd.f32 %v539, %v611
    %v613 = vpop.f32.mrf.mxu0
    %v614 = vadd.f32 %v541, %v613
    %615 = vdwg.mxu0
    %v616 = vld [vmem:[#allocation5 + $0x28] sm:$0xff]
    %v617 = vld [vmem:[#allocation5 + $0x88] sm:$0xff]
    %v618 = vld [vmem:[#allocation5 + $0xe8] sm:$0xff]
    %v619 = vld [vmem:[#allocation5 + $0x148] sm:$0xff]
    %v624 = vunpack.c.l.b16 %v616
    %v625 = vunpack.c.h.b16 %v616
    %v626 = vunpack.c.l.b16 %v617
    %v627 = vunpack.c.h.b16 %v617
    %v628 = vunpack.c.l.b16 %v618
    %v629 = vunpack.c.h.b16 %v618
    %v630 = vunpack.c.l.b16 %v619
    %v631 = vunpack.c.h.b16 %v619
    %v632 = vpack.c.b16 %v626, %v624
    %v633 = vpack.c.b16 %v627, %v625
    %v634 = vpack.c.b16 %v630, %v628
    %v635 = vpack.c.b16 %v631, %v629
    %640 = vmatprep.subr.bf16.mxu0 0
    %641 = vmatpush1.bf16.msra.mxu0 0
    %642 = vmatprep.subr.bf16.mxu0 0
    %643 = vmatpush1.bf16.msra.mxu0 0
    %644 = vmatprep.subr.bf16.mxu0 0
    %645 = vmatpush1.bf16.msra.mxu0 0
    %646 = vmatprep.subr.bf16.mxu0 0
    %647 = vmatpush1.bf16.msra.mxu0 0
    %648 = vmatprep.subr.bf16.mxu0 0
    %649 = vmatpush1.bf16.msra.mxu0 0
    %650 = vmatprep.subr.bf16.mxu0 0
    %651 = vmatpush1.bf16.msra.mxu0 0
    %652 = vmatprep.subr.bf16.mxu0 %v635
    %653 = vmatpush1.bf16.msra.mxu0 %v634
    %654 = vmatprep.subr.bf16.mxu0 %v633
    %655 = vmatpush1.bf16.msra.mxu0 %v632
    %656 = vmatprep.subr.bf16.mxu0 0
    %657 = vmatpush2.bf16.msra.mxu0 0
    %658 = vmatprep.subr.bf16.mxu0 0
    %659 = vmatpush2.bf16.msra.mxu0 0
    %660 = vmatprep.subr.bf16.mxu0 0
    %661 = vmatpush2.bf16.msra.mxu0 0
    %662 = vmatprep.subr.bf16.mxu0 0
    %663 = vmatpush2.bf16.msra.mxu0 0
    %664 = vmatprep.subr.bf16.mxu0 0
    %665 = vmatpush2.bf16.msra.mxu0 0
    %666 = vmatprep.subr.bf16.mxu0 0
    %667 = vmatpush2.bf16.msra.mxu0 0
    %668 = vmatprep.subr.bf16.mxu0 0
    %669 = vmatpush2.bf16.msra.mxu0 0
    %670 = vmatprep.subr.bf16.mxu0 0
    %671 = vmatpush2.bf16.msra.mxu0 0
    %672 = vmatprep.mubr.bf16.mxu0 0
    %673 = vmatmul.mubr.bf16.gmra.mxu0 %v368
    %v674 = vpop.f32.mrf.mxu0
    %v675 = vadd.f32 0.0, %v674
    %v676 = vpop.f32.mrf.mxu0
    %v677 = vadd.f32 0.0, %v676
    %v678 = vpop.f32.mrf.mxu0
    %v679 = vadd.f32 0.0, %v678
    %v680 = vpop.f32.mrf.mxu0
    %v681 = vadd.f32 0.0, %v680
    %682 = vmatprep.mubr.bf16.mxu0 0
    %683 = vmatmul.mubr.bf16.gmra.mxu0 %v371
    %v684 = vpop.f32.mrf.mxu0
    %v685 = vadd.f32 0.0, %v684
    %v686 = vpop.f32.mrf.mxu0
    %v687 = vadd.f32 0.0, %v686
    %v688 = vpop.f32.mrf.mxu0
    %v689 = vadd.f32 0.0, %v688
    %v690 = vpop.f32.mrf.mxu0
    %v691 = vadd.f32 0.0, %v690
    %692 = vdwg.mxu0
    %v693 = vadd.f32 %v598, %v675
    %v694 = vadd.f32 %v600, %v677
    %v695 = vadd.f32 %v602, %v679
    %v696 = vadd.f32 %v604, %v681
    %v697 = vadd.f32 %v608, %v685
    %v698 = vadd.f32 %v610, %v687
    %v699 = vadd.f32 %v612, %v689
    %v700 = vadd.f32 %v614, %v691
    %v701 = vrot.slane %v55, 2
    %v702 = vrot.slane %v56, 2
    %v703 = vrot.slane %v57, 2
    %v704 = vrot.slane %v58, 2
    %vm705 = vcmp.lt.s32.totalorder %v60, 6
    %v706 = vsel %vm705, %v703, %v704
    %v707 = vsel %vm705, %v702, %v703
    %v708 = vsel %vm705, %v701, %v702
    %v709 = vsel %vm705, %v704, %v701
    %v710 = vadd.s32 %v108, 2
    %v711 = vadd.s32 %v109, 2
    %v712 = vadd.s32 %v110, 2
    %v713 = vadd.s32 %v111, 2
    %vm714 = vcmp.ge.s32.totalorder %v710, 0
    %vm715 = vcmp.ge.s32.totalorder %v711, 0
    %vm716 = vcmp.ge.s32.totalorder %v712, 0
    %vm717 = vcmp.ge.s32.totalorder %v713, 0
    %vm718 = vcmp.lt.s32.totalorder %v710, 16
    %vm719 = vcmp.lt.s32.totalorder %v711, 16
    %vm720 = vcmp.lt.s32.totalorder %v712, 16
    %vm721 = vcmp.lt.s32.totalorder %v713, 16
    %vm722 = vmand %vm714, %vm718
    %vm723 = vmand %vm715, %vm719
    %vm724 = vmand %vm716, %vm720
    %vm725 = vmand %vm717, %vm721
    %v726 = vsel %vm722, %v708, 0.0
    %v727 = vsel %vm723, %v707, 0.0
    %v728 = vsel %vm724, %v706, 0.0
    %v729 = vsel %vm725, %v709, 0.0
    %v730 = vpack.c.bf16 %v727, %v726
    %v731 = vpack.c.bf16 %v729, %v728
    %v732 = vld [vmem:[#allocation5 + $0x30] sm:$0xff]
    %v733 = vld [vmem:[#allocation5 + $0x90] sm:$0xff]
    %v734 = vld [vmem:[#allocation5 + $0xf0] sm:$0xff]
    %v735 = vld [vmem:[#allocation5 + $0x150] sm:$0xff]
    %v740 = vunpack.c.l.b16 %v732
    %v741 = vunpack.c.h.b16 %v732
    %v742 = vunpack.c.l.b16 %v733
    %v743 = vunpack.c.h.b16 %v733
    %v744 = vunpack.c.l.b16 %v734
    %v745 = vunpack.c.h.b16 %v734
    %v746 = vunpack.c.l.b16 %v735
    %v747 = vunpack.c.h.b16 %v735
    %v748 = vpack.c.b16 %v742, %v740
    %v749 = vpack.c.b16 %v743, %v741
    %v750 = vpack.c.b16 %v746, %v744
    %v751 = vpack.c.b16 %v747, %v745
    %v757 = vsel %vm173, %v730, 0
    %v760 = vsel %vm173, %v731, 0
    %762 = vmatprep.subr.bf16.mxu0 0
    %763 = vmatpush1.bf16.msra.mxu0 0
    %764 = vmatprep.subr.bf16.mxu0 0
    %765 = vmatpush1.bf16.msra.mxu0 0
    %766 = vmatprep.subr.bf16.mxu0 0
    %767 = vmatpush1.bf16.msra.mxu0 0
    %768 = vmatprep.subr.bf16.mxu0 0
    %769 = vmatpush1.bf16.msra.mxu0 0
    %770 = vmatprep.subr.bf16.mxu0 0
    %771 = vmatpush1.bf16.msra.mxu0 0
    %772 = vmatprep.subr.bf16.mxu0 0
    %773 = vmatpush1.bf16.msra.mxu0 0
    %774 = vmatprep.subr.bf16.mxu0 %v751
    %775 = vmatpush1.bf16.msra.mxu0 %v750
    %776 = vmatprep.subr.bf16.mxu0 %v749
    %777 = vmatpush1.bf16.msra.mxu0 %v748
    %778 = vmatprep.subr.bf16.mxu0 0
    %779 = vmatpush2.bf16.msra.mxu0 0
    %780 = vmatprep.subr.bf16.mxu0 0
    %781 = vmatpush2.bf16.msra.mxu0 0
    %782 = vmatprep.subr.bf16.mxu0 0
    %783 = vmatpush2.bf16.msra.mxu0 0
    %784 = vmatprep.subr.bf16.mxu0 0
    %785 = vmatpush2.bf16.msra.mxu0 0
    %786 = vmatprep.subr.bf16.mxu0 0
    %787 = vmatpush2.bf16.msra.mxu0 0
    %788 = vmatprep.subr.bf16.mxu0 0
    %789 = vmatpush2.bf16.msra.mxu0 0
    %790 = vmatprep.subr.bf16.mxu0 0
    %791 = vmatpush2.bf16.msra.mxu0 0
    %792 = vmatprep.subr.bf16.mxu0 0
    %793 = vmatpush2.bf16.msra.mxu0 0
    %794 = vmatprep.mubr.bf16.mxu0 0
    %795 = vmatmul.mubr.bf16.gmra.mxu0 %v757
    %v796 = vpop.f32.mrf.mxu0
    %v797 = vadd.f32 0.0, %v796
    %v798 = vpop.f32.mrf.mxu0
    %v799 = vadd.f32 0.0, %v798
    %v800 = vpop.f32.mrf.mxu0
    %v801 = vadd.f32 0.0, %v800
    %v802 = vpop.f32.mrf.mxu0
    %v803 = vadd.f32 0.0, %v802
    %804 = vmatprep.mubr.bf16.mxu0 0
    %805 = vmatmul.mubr.bf16.gmra.mxu0 %v760
    %v806 = vpop.f32.mrf.mxu0
    %v807 = vadd.f32 0.0, %v806
    %v808 = vpop.f32.mrf.mxu0
    %v809 = vadd.f32 0.0, %v808
    %v810 = vpop.f32.mrf.mxu0
    %v811 = vadd.f32 0.0, %v810
    %v812 = vpop.f32.mrf.mxu0
    %v813 = vadd.f32 0.0, %v812
    %814 = vdwg.mxu0
    %v815 = vadd.f32 %v693, %v797
    %v816 = vadd.f32 %v694, %v799
    %v817 = vadd.f32 %v695, %v801
    %v818 = vadd.f32 %v696, %v803
    %v819 = vadd.f32 %v697, %v807
    %v820 = vadd.f32 %v698, %v809
    %v821 = vadd.f32 %v699, %v811
    %v822 = vadd.f32 %v700, %v813
    %v823 = vld [vmem:[#allocation7 + $0x2] sm:$0x3]
    %v825 = vlaneseq
    %v826 = vshrl.u32 %v825, 7
    %v827 = vsub.s32 0, %v826
    %v828 = vrot.slane %v823, %v827
    %v829 = vlaneseq
    %v830 = vshrl.u32 %v829, 7
    %v831 = vsub.s32 1, %v830
    %v832 = vrot.slane %v823, %v831
    %v835 = vadd.f32 %v815, %v828
    %v836 = vadd.f32 %v816, %v832
    %v837 = vadd.f32 %v817, %v828
    %v838 = vadd.f32 %v818, %v832
    %v839 = vadd.f32 %v819, %v828
    %v840 = vadd.f32 %v820, %v832
    %v841 = vadd.f32 %v821, %v828
    %v842 = vadd.f32 %v822, %v832
    %v843 = vmax.f32 %v835, 0.0
    %v844 = vmax.f32 %v836, 0.0
    %v845 = vmax.f32 %v837, 0.0
    %v846 = vmax.f32 %v838, 0.0
    %v847 = vmax.f32 %v839, 0.0
    %v848 = vmax.f32 %v840, 0.0
    %v849 = vmax.f32 %v841, 0.0
    %v850 = vmax.f32 %v842, 0.0
    %v851 = vrot.slane %v55, 6
    %v852 = vrot.slane %v56, 6
    %v853 = vrot.slane %v57, 6
    %v854 = vrot.slane %v58, 6
    %vm855 = vcmp.lt.s32.totalorder %v60, 2
    %v856 = vsel %vm855, %v853, %v854
    %v857 = vsel %vm855, %v852, %v853
    %v858 = vsel %vm855, %v851, %v852
    %v859 = vsel %vm855, %v854, %v851
    %v860 = vadd.s32 %v108, 4294967294
    %v861 = vadd.s32 %v109, 4294967294
    %v862 = vadd.s32 %v110, 4294967294
    %v863 = vadd.s32 %v111, 4294967294
    %vm864 = vcmp.ge.s32.totalorder %v860, 0
    %vm865 = vcmp.ge.s32.totalorder %v861, 0
    %vm866 = vcmp.ge.s32.totalorder %v862, 0
    %vm867 = vcmp.ge.s32.totalorder %v863, 0
    %vm868 = vcmp.lt.s32.totalorder %v860, 16
    %vm869 = vcmp.lt.s32.totalorder %v861, 16
    %vm870 = vcmp.lt.s32.totalorder %v862, 16
    %vm871 = vcmp.lt.s32.totalorder %v863, 16
    %vm872 = vmand %vm864, %vm868
    %vm873 = vmand %vm865, %vm869
    %vm874 = vmand %vm866, %vm870
    %vm875 = vmand %vm867, %vm871
    %v876 = vsel %vm872, %v859, 0.0
    %v877 = vsel %vm873, %v858, 0.0
    %v878 = vsel %vm874, %v857, 0.0
    %v879 = vsel %vm875, %v856, 0.0
    %v880 = vpack.c.bf16 %v877, %v876
    %v881 = vpack.c.bf16 %v879, %v878
    %v882 = vld [vmem:[#allocation5 + $0x38] sm:$0xff]
    %v883 = vld [vmem:[#allocation5 + $0x98] sm:$0xff]
    %v884 = vld [vmem:[#allocation5 + $0xf8] sm:$0xff]
    %v885 = vld [vmem:[#allocation5 + $0x158] sm:$0xff]
    %v886 = vld [vmem:[#allocation5 + $0x40] sm:$0xff]
    %v887 = vld [vmem:[#allocation5 + $0xa0] sm:$0xff]
    %v888 = vld [vmem:[#allocation5 + $0x100] sm:$0xff]
    %v889 = vld [vmem:[#allocation5 + $0x160] sm:$0xff]
    %v894 = vunpack.c.l.b16 %v886
    %v895 = vunpack.c.h.b16 %v886
    %v896 = vunpack.c.l.b16 %v887
    %v897 = vunpack.c.h.b16 %v887
    %v898 = vunpack.c.l.b16 %v888
    %v899 = vunpack.c.h.b16 %v888
    %v900 = vunpack.c.l.b16 %v889
    %v901 = vunpack.c.h.b16 %v889
    %v902 = vpack.c.b16 %v896, %v894
    %v903 = vpack.c.b16 %v897, %v895
    %v904 = vpack.c.b16 %v900, %v898
    %v905 = vpack.c.b16 %v901, %v899
    %910 = vmatprep.subr.bf16.mxu0 0
    %911 = vmatpush1.bf16.msra.mxu0 0
    %912 = vmatprep.subr.bf16.mxu0 0
    %913 = vmatpush1.bf16.msra.mxu0 0
    %914 = vmatprep.subr.bf16.mxu0 0
    %915 = vmatpush1.bf16.msra.mxu0 0
    %916 = vmatprep.subr.bf16.mxu0 0
    %917 = vmatpush1.bf16.msra.mxu0 0
    %918 = vmatprep.subr.bf16.mxu0 0
    %919 = vmatpush1.bf16.msra.mxu0 0
    %920 = vmatprep.subr.bf16.mxu0 0
    %921 = vmatpush1.bf16.msra.mxu0 0
    %922 = vmatprep.subr.bf16.mxu0 %v905
    %923 = vmatpush1.bf16.msra.mxu0 %v904
    %924 = vmatprep.subr.bf16.mxu0 %v903
    %925 = vmatpush1.bf16.msra.mxu0 %v902
    %926 = vmatprep.subr.bf16.mxu0 0
    %927 = vmatpush2.bf16.msra.mxu0 0
    %928 = vmatprep.subr.bf16.mxu0 0
    %929 = vmatpush2.bf16.msra.mxu0 0
    %930 = vmatprep.subr.bf16.mxu0 0
    %931 = vmatpush2.bf16.msra.mxu0 0
    %932 = vmatprep.subr.bf16.mxu0 0
    %933 = vmatpush2.bf16.msra.mxu0 0
    %934 = vmatprep.subr.bf16.mxu0 0
    %935 = vmatpush2.bf16.msra.mxu0 0
    %936 = vmatprep.subr.bf16.mxu0 0
    %937 = vmatpush2.bf16.msra.mxu0 0
    %938 = vmatprep.subr.bf16.mxu0 0
    %939 = vmatpush2.bf16.msra.mxu0 0
    %940 = vmatprep.subr.bf16.mxu0 0
    %941 = vmatpush2.bf16.msra.mxu0 0
    %942 = vmatprep.mubr.bf16.mxu0 0
    %943 = vmatmul.mubr.bf16.gmra.mxu0 %v254
    %v944 = vpop.f32.mrf.mxu0
    %v945 = vadd.f32 0.0, %v944
    %v946 = vpop.f32.mrf.mxu0
    %v947 = vadd.f32 0.0, %v946
    %v948 = vpop.f32.mrf.mxu0
    %v949 = vadd.f32 0.0, %v948
    %v950 = vpop.f32.mrf.mxu0
    %v951 = vadd.f32 0.0, %v950
    %952 = vmatprep.mubr.bf16.mxu0 0
    %953 = vmatmul.mubr.bf16.gmra.mxu0 %v257
    %v954 = vpop.f32.mrf.mxu0
    %v955 = vadd.f32 0.0, %v954
    %v956 = vpop.f32.mrf.mxu0
    %v957 = vadd.f32 0.0, %v956
    %v958 = vpop.f32.mrf.mxu0
    %v959 = vadd.f32 0.0, %v958
    %v960 = vpop.f32.mrf.mxu0
    %v961 = vadd.f32 0.0, %v960
    %962 = vdwg.mxu0
    %v967 = vunpack.c.l.b16 %v882
    %v968 = vunpack.c.h.b16 %v882
    %v969 = vunpack.c.l.b16 %v883
    %v970 = vunpack.c.h.b16 %v883
    %v971 = vunpack.c.l.b16 %v884
    %v972 = vunpack.c.h.b16 %v884
    %v973 = vunpack.c.l.b16 %v885
    %v974 = vunpack.c.h.b16 %v885
    %v975 = vpack.c.b16 %v969, %v967
    %v976 = vpack.c.b16 %v970, %v968
    %v977 = vpack.c.b16 %v973, %v971
    %v978 = vpack.c.b16 %v974, %v972
    %v984 = vsel %vm173, %v880, 0
    %v987 = vsel %vm173, %v881, 0
    %989 = vmatprep.subr.bf16.mxu0 0
    %990 = vmatpush1.bf16.msra.mxu0 0
    %991 = vmatprep.subr.bf16.mxu0 0
    %992 = vmatpush1.bf16.msra.mxu0 0
    %993 = vmatprep.subr.bf16.mxu0 0
    %994 = vmatpush1.bf16.msra.mxu0 0
    %995 = vmatprep.subr.bf16.mxu0 0
    %996 = vmatpush1.bf16.msra.mxu0 0
    %997 = vmatprep.subr.bf16.mxu0 0
    %998 = vmatpush1.bf16.msra.mxu0 0
    %999 = vmatprep.subr.bf16.mxu0 0
    %1000 = vmatpush1.bf16.msra.mxu0 0
    %1001 = vmatprep.subr.bf16.mxu0 %v978
    %1002 = vmatpush1.bf16.msra.mxu0 %v977
    %1003 = vmatprep.subr.bf16.mxu0 %v976
    %1004 = vmatpush1.bf16.msra.mxu0 %v975
    %1005 = vmatprep.subr.bf16.mxu0 0
    %1006 = vmatpush2.bf16.msra.mxu0 0
    %1007 = vmatprep.subr.bf16.mxu0 0
    %1008 = vmatpush2.bf16.msra.mxu0 0
    %1009 = vmatprep.subr.bf16.mxu0 0
    %1010 = vmatpush2.bf16.msra.mxu0 0
    %1011 = vmatprep.subr.bf16.mxu0 0
    %1012 = vmatpush2.bf16.msra.mxu0 0
    %1013 = vmatprep.subr.bf16.mxu0 0
    %1014 = vmatpush2.bf16.msra.mxu0 0
    %1015 = vmatprep.subr.bf16.mxu0 0
    %1016 = vmatpush2.bf16.msra.mxu0 0
    %1017 = vmatprep.subr.bf16.mxu0 0
    %1018 = vmatpush2.bf16.msra.mxu0 0
    %1019 = vmatprep.subr.bf16.mxu0 0
    %1020 = vmatpush2.bf16.msra.mxu0 0
    %1021 = vmatprep.mubr.bf16.mxu0 0
    %1022 = vmatmul.mubr.bf16.gmra.mxu0 %v984
    %v1023 = vpop.f32.mrf.mxu0
    %v1024 = vadd.f32 %v945, %v1023
    %v1025 = vpop.f32.mrf.mxu0
    %v1026 = vadd.f32 %v947, %v1025
    %v1027 = vpop.f32.mrf.mxu0
    %v1028 = vadd.f32 %v949, %v1027
    %v1029 = vpop.f32.mrf.mxu0
    %v1030 = vadd.f32 %v951, %v1029
    %1031 = vmatprep.mubr.bf16.mxu0 0
    %1032 = vmatmul.mubr.bf16.gmra.mxu0 %v987
    %v1033 = vpop.f32.mrf.mxu0
    %v1034 = vadd.f32 %v955, %v1033
    %v1035 = vpop.f32.mrf.mxu0
    %v1036 = vadd.f32 %v957, %v1035
    %v1037 = vpop.f32.mrf.mxu0
    %v1038 = vadd.f32 %v959, %v1037
    %v1039 = vpop.f32.mrf.mxu0
    %v1040 = vadd.f32 %v961, %v1039
    %1041 = vdwg.mxu0
    %v1042 = vld [vmem:[#allocation5 + $0x48] sm:$0xff]
    %v1043 = vld [vmem:[#allocation5 + $0xa8] sm:$0xff]
    %v1044 = vld [vmem:[#allocation5 + $0x108] sm:$0xff]
    %v1045 = vld [vmem:[#allocation5 + $0x168] sm:$0xff]
    %v1050 = vunpack.c.l.b16 %v1042
    %v1051 = vunpack.c.h.b16 %v1042
    %v1052 = vunpack.c.l.b16 %v1043
    %v1053 = vunpack.c.h.b16 %v1043
    %v1054 = vunpack.c.l.b16 %v1044
    %v1055 = vunpack.c.h.b16 %v1044
    %v1056 = vunpack.c.l.b16 %v1045
    %v1057 = vunpack.c.h.b16 %v1045
    %v1058 = vpack.c.b16 %v1052, %v1050
    %v1059 = vpack.c.b16 %v1053, %v1051
    %v1060 = vpack.c.b16 %v1056, %v1054
    %v1061 = vpack.c.b16 %v1057, %v1055
    %1066 = vmatprep.subr.bf16.mxu0 0
    %1067 = vmatpush1.bf16.msra.mxu0 0
    %1068 = vmatprep.subr.bf16.mxu0 0
    %1069 = vmatpush1.bf16.msra.mxu0 0
    %1070 = vmatprep.subr.bf16.mxu0 0
    %1071 = vmatpush1.bf16.msra.mxu0 0
    %1072 = vmatprep.subr.bf16.mxu0 0
    %1073 = vmatpush1.bf16.msra.mxu0 0
    %1074 = vmatprep.subr.bf16.mxu0 0
    %1075 = vmatpush1.bf16.msra.mxu0 0
    %1076 = vmatprep.subr.bf16.mxu0 0
    %1077 = vmatpush1.bf16.msra.mxu0 0
    %1078 = vmatprep.subr.bf16.mxu0 %v1061
    %1079 = vmatpush1.bf16.msra.mxu0 %v1060
    %1080 = vmatprep.subr.bf16.mxu0 %v1059
    %1081 = vmatpush1.bf16.msra.mxu0 %v1058
    %1082 = vmatprep.subr.bf16.mxu0 0
    %1083 = vmatpush2.bf16.msra.mxu0 0
    %1084 = vmatprep.subr.bf16.mxu0 0
    %1085 = vmatpush2.bf16.msra.mxu0 0
    %1086 = vmatprep.subr.bf16.mxu0 0
    %1087 = vmatpush2.bf16.msra.mxu0 0
    %1088 = vmatprep.subr.bf16.mxu0 0
    %1089 = vmatpush2.bf16.msra.mxu0 0
    %1090 = vmatprep.subr.bf16.mxu0 0
    %1091 = vmatpush2.bf16.msra.mxu0 0
    %1092 = vmatprep.subr.bf16.mxu0 0
    %1093 = vmatpush2.bf16.msra.mxu0 0
    %1094 = vmatprep.subr.bf16.mxu0 0
    %1095 = vmatpush2.bf16.msra.mxu0 0
    %1096 = vmatprep.subr.bf16.mxu0 0
    %1097 = vmatpush2.bf16.msra.mxu0 0
    %1098 = vmatprep.mubr.bf16.mxu0 0
    %1099 = vmatmul.mubr.bf16.gmra.mxu0 %v175
    %v1100 = vpop.f32.mrf.mxu0
    %v1101 = vadd.f32 0.0, %v1100
    %v1102 = vpop.f32.mrf.mxu0
    %v1103 = vadd.f32 0.0, %v1102
    %v1104 = vpop.f32.mrf.mxu0
    %v1105 = vadd.f32 0.0, %v1104
    %v1106 = vpop.f32.mrf.mxu0
    %v1107 = vadd.f32 0.0, %v1106
    %1108 = vmatprep.mubr.bf16.mxu0 0
    %1109 = vmatmul.mubr.bf16.gmra.mxu0 %v178
    %v1110 = vpop.f32.mrf.mxu0
    %v1111 = vadd.f32 0.0, %v1110
    %v1112 = vpop.f32.mrf.mxu0
    %v1113 = vadd.f32 0.0, %v1112
    %v1114 = vpop.f32.mrf.mxu0
    %v1115 = vadd.f32 0.0, %v1114
    %v1116 = vpop.f32.mrf.mxu0
    %v1117 = vadd.f32 0.0, %v1116
    %1118 = vdwg.mxu0
    %v1119 = vadd.f32 %v1024, %v1101
    %v1120 = vadd.f32 %v1026, %v1103
    %v1121 = vadd.f32 %v1028, %v1105
    %v1122 = vadd.f32 %v1030, %v1107
    %v1123 = vadd.f32 %v1034, %v1111
    %v1124 = vadd.f32 %v1036, %v1113
    %v1125 = vadd.f32 %v1038, %v1115
    %v1126 = vadd.f32 %v1040, %v1117
    %v1127 = vld [vmem:[#allocation5 + $0x50] sm:$0xff]
    %v1128 = vld [vmem:[#allocation5 + $0xb0] sm:$0xff]
    %v1129 = vld [vmem:[#allocation5 + $0x110] sm:$0xff]
    %v1130 = vld [vmem:[#allocation5 + $0x170] sm:$0xff]
    %v1135 = vunpack.c.l.b16 %v1127
    %v1136 = vunpack.c.h.b16 %v1127
    %v1137 = vunpack.c.l.b16 %v1128
    %v1138 = vunpack.c.h.b16 %v1128
    %v1139 = vunpack.c.l.b16 %v1129
    %v1140 = vunpack.c.h.b16 %v1129
    %v1141 = vunpack.c.l.b16 %v1130
    %v1142 = vunpack.c.h.b16 %v1130
    %v1143 = vpack.c.b16 %v1137, %v1135
    %v1144 = vpack.c.b16 %v1138, %v1136
    %v1145 = vpack.c.b16 %v1141, %v1139
    %v1146 = vpack.c.b16 %v1142, %v1140
    %1151 = vmatprep.subr.bf16.mxu0 0
    %1152 = vmatpush1.bf16.msra.mxu0 0
    %1153 = vmatprep.subr.bf16.mxu0 0
    %1154 = vmatpush1.bf16.msra.mxu0 0
    %1155 = vmatprep.subr.bf16.mxu0 0
    %1156 = vmatpush1.bf16.msra.mxu0 0
    %1157 = vmatprep.subr.bf16.mxu0 0
    %1158 = vmatpush1.bf16.msra.mxu0 0
    %1159 = vmatprep.subr.bf16.mxu0 0
    %1160 = vmatpush1.bf16.msra.mxu0 0
    %1161 = vmatprep.subr.bf16.mxu0 0
    %1162 = vmatpush1.bf16.msra.mxu0 0
    %1163 = vmatprep.subr.bf16.mxu0 %v1146
    %1164 = vmatpush1.bf16.msra.mxu0 %v1145
    %1165 = vmatprep.subr.bf16.mxu0 %v1144
    %1166 = vmatpush1.bf16.msra.mxu0 %v1143
    %1167 = vmatprep.subr.bf16.mxu0 0
    %1168 = vmatpush2.bf16.msra.mxu0 0
    %1169 = vmatprep.subr.bf16.mxu0 0
    %1170 = vmatpush2.bf16.msra.mxu0 0
    %1171 = vmatprep.subr.bf16.mxu0 0
    %1172 = vmatpush2.bf16.msra.mxu0 0
    %1173 = vmatprep.subr.bf16.mxu0 0
    %1174 = vmatpush2.bf16.msra.mxu0 0
    %1175 = vmatprep.subr.bf16.mxu0 0
    %1176 = vmatpush2.bf16.msra.mxu0 0
    %1177 = vmatprep.subr.bf16.mxu0 0
    %1178 = vmatpush2.bf16.msra.mxu0 0
    %1179 = vmatprep.subr.bf16.mxu0 0
    %1180 = vmatpush2.bf16.msra.mxu0 0
    %1181 = vmatprep.subr.bf16.mxu0 0
    %1182 = vmatpush2.bf16.msra.mxu0 0
    %1183 = vmatprep.mubr.bf16.mxu0 0
    %1184 = vmatmul.mubr.bf16.gmra.mxu0 %v368
    %v1185 = vpop.f32.mrf.mxu0
    %v1186 = vadd.f32 0.0, %v1185
    %v1187 = vpop.f32.mrf.mxu0
    %v1188 = vadd.f32 0.0, %v1187
    %v1189 = vpop.f32.mrf.mxu0
    %v1190 = vadd.f32 0.0, %v1189
    %v1191 = vpop.f32.mrf.mxu0
    %v1192 = vadd.f32 0.0, %v1191
    %1193 = vmatprep.mubr.bf16.mxu0 0
    %1194 = vmatmul.mubr.bf16.gmra.mxu0 %v371
    %v1195 = vpop.f32.mrf.mxu0
    %v1196 = vadd.f32 0.0, %v1195
    %v1197 = vpop.f32.mrf.mxu0
    %v1198 = vadd.f32 0.0, %v1197
    %v1199 = vpop.f32.mrf.mxu0
    %v1200 = vadd.f32 0.0, %v1199
    %v1201 = vpop.f32.mrf.mxu0
    %v1202 = vadd.f32 0.0, %v1201
    %1203 = vdwg.mxu0
    %v1204 = vadd.f32 %v1119, %v1186
    %v1205 = vadd.f32 %v1120, %v1188
    %v1206 = vadd.f32 %v1121, %v1190
    %v1207 = vadd.f32 %v1122, %v1192
    %v1208 = vadd.f32 %v1123, %v1196
    %v1209 = vadd.f32 %v1124, %v1198
    %v1210 = vadd.f32 %v1125, %v1200
    %v1211 = vadd.f32 %v1126, %v1202
    %v1212 = vld [vmem:[#allocation5 + $0x58] sm:$0xff]
    %v1213 = vld [vmem:[#allocation5 + $0xb8] sm:$0xff]
    %v1214 = vld [vmem:[#allocation5 + $0x118] sm:$0xff]
    %v1215 = vld [vmem:[#allocation5 + $0x178] sm:$0xff]
    %v1220 = vunpack.c.l.b16 %v1212
    %v1221 = vunpack.c.h.b16 %v1212
    %v1222 = vunpack.c.l.b16 %v1213
    %v1223 = vunpack.c.h.b16 %v1213
    %v1224 = vunpack.c.l.b16 %v1214
    %v1225 = vunpack.c.h.b16 %v1214
    %v1226 = vunpack.c.l.b16 %v1215
    %v1227 = vunpack.c.h.b16 %v1215
    %v1228 = vpack.c.b16 %v1222, %v1220
    %v1229 = vpack.c.b16 %v1223, %v1221
    %v1230 = vpack.c.b16 %v1226, %v1224
    %v1231 = vpack.c.b16 %v1227, %v1225
    %1236 = vmatprep.subr.bf16.mxu0 0
    %1237 = vmatpush1.bf16.msra.mxu0 0
    %1238 = vmatprep.subr.bf16.mxu0 0
    %1239 = vmatpush1.bf16.msra.mxu0 0
    %1240 = vmatprep.subr.bf16.mxu0 0
    %1241 = vmatpush1.bf16.msra.mxu0 0
    %1242 = vmatprep.subr.bf16.mxu0 0
    %1243 = vmatpush1.bf16.msra.mxu0 0
    %1244 = vmatprep.subr.bf16.mxu0 0
    %1245 = vmatpush1.bf16.msra.mxu0 0
    %1246 = vmatprep.subr.bf16.mxu0 0
    %1247 = vmatpush1.bf16.msra.mxu0 0
    %1248 = vmatprep.subr.bf16.mxu0 %v1231
    %1249 = vmatpush1.bf16.msra.mxu0 %v1230
    %1250 = vmatprep.subr.bf16.mxu0 %v1229
    %1251 = vmatpush1.bf16.msra.mxu0 %v1228
    %1252 = vmatprep.subr.bf16.mxu0 0
    %1253 = vmatpush2.bf16.msra.mxu0 0
    %1254 = vmatprep.subr.bf16.mxu0 0
    %1255 = vmatpush2.bf16.msra.mxu0 0
    %1256 = vmatprep.subr.bf16.mxu0 0
    %1257 = vmatpush2.bf16.msra.mxu0 0
    %1258 = vmatprep.subr.bf16.mxu0 0
    %1259 = vmatpush2.bf16.msra.mxu0 0
    %1260 = vmatprep.subr.bf16.mxu0 0
    %1261 = vmatpush2.bf16.msra.mxu0 0
    %1262 = vmatprep.subr.bf16.mxu0 0
    %1263 = vmatpush2.bf16.msra.mxu0 0
    %1264 = vmatprep.subr.bf16.mxu0 0
    %1265 = vmatpush2.bf16.msra.mxu0 0
    %1266 = vmatprep.subr.bf16.mxu0 0
    %1267 = vmatpush2.bf16.msra.mxu0 0
    %1268 = vmatprep.mubr.bf16.mxu0 0
    %1269 = vmatmul.mubr.bf16.gmra.mxu0 %v757
    %v1270 = vpop.f32.mrf.mxu0
    %v1271 = vadd.f32 0.0, %v1270
    %v1272 = vpop.f32.mrf.mxu0
    %v1273 = vadd.f32 0.0, %v1272
    %v1274 = vpop.f32.mrf.mxu0
    %v1275 = vadd.f32 0.0, %v1274
    %v1276 = vpop.f32.mrf.mxu0
    %v1277 = vadd.f32 0.0, %v1276
    %1278 = vmatprep.mubr.bf16.mxu0 0
    %1279 = vmatmul.mubr.bf16.gmra.mxu0 %v760
    %v1280 = vpop.f32.mrf.mxu0
    %v1281 = vadd.f32 0.0, %v1280
    %v1282 = vpop.f32.mrf.mxu0
    %v1283 = vadd.f32 0.0, %v1282
    %v1284 = vpop.f32.mrf.mxu0
    %v1285 = vadd.f32 0.0, %v1284
    %v1286 = vpop.f32.mrf.mxu0
    %v1287 = vadd.f32 0.0, %v1286
    %1288 = vdwg.mxu0
    %v1289 = vadd.f32 %v1204, %v1271
    %v1290 = vadd.f32 %v1205, %v1273
    %v1291 = vadd.f32 %v1206, %v1275
    %v1292 = vadd.f32 %v1207, %v1277
    %v1293 = vadd.f32 %v1208, %v1281
    %v1294 = vadd.f32 %v1209, %v1283
    %v1295 = vadd.f32 %v1210, %v1285
    %v1296 = vadd.f32 %v1211, %v1287
    %v1297 = vld [vmem:[#allocation7 + $0x4] sm:$0x3]
    %v1299 = vlaneseq
    %v1300 = vshrl.u32 %v1299, 7
    %v1301 = vsub.s32 0, %v1300
    %v1302 = vrot.slane %v1297, %v1301
    %v1303 = vlaneseq
    %v1304 = vshrl.u32 %v1303, 7
    %v1305 = vsub.s32 1, %v1304
    %v1306 = vrot.slane %v1297, %v1305
    %v1309 = vadd.f32 %v1289, %v1302
    %v1310 = vadd.f32 %v1290, %v1306
    %v1311 = vadd.f32 %v1291, %v1302
    %v1312 = vadd.f32 %v1292, %v1306
    %v1313 = vadd.f32 %v1293, %v1302
    %v1314 = vadd.f32 %v1294, %v1306
    %v1315 = vadd.f32 %v1295, %v1302
    %v1316 = vadd.f32 %v1296, %v1306
    %v1317 = vmax.f32 %v1309, 0.0
    %v1318 = vmax.f32 %v1310, 0.0
    %v1319 = vmax.f32 %v1311, 0.0
    %v1320 = vmax.f32 %v1312, 0.0
    %v1321 = vmax.f32 %v1313, 0.0
    %v1322 = vmax.f32 %v1314, 0.0
    %v1323 = vmax.f32 %v1315, 0.0
    %v1324 = vmax.f32 %v1316, 0.0
    %v1325 = vmax.f32 %v454, %v456
    %v1326 = vrot.slane %v1325, 4
    %v1327 = vmax.f32 %v1325, %v1326
    %v1328 = vrot.slane %v1327, 2
    %v1329 = vmax.f32 %v1327, %v1328
    %v1330 = vrot.slane %v1329, 1
    %v1331 = vmax.f32 %v1329, %v1330
    %v1332 = vmax.f32 %v455, %v457
    %v1333 = vrot.slane %v1332, 4
    %v1334 = vmax.f32 %v1332, %v1333
    %v1335 = vrot.slane %v1334, 2
    %v1336 = vmax.f32 %v1334, %v1335
    %v1337 = vrot.slane %v1336, 1
    %v1338 = vmax.f32 %v1336, %v1337
    %v1339 = vmax.f32 %v843, %v845
    %v1340 = vrot.slane %v1339, 4
    %v1341 = vmax.f32 %v1339, %v1340
    %v1342 = vrot.slane %v1341, 2
    %v1343 = vmax.f32 %v1341, %v1342
    %v1344 = vrot.slane %v1343, 1
    %v1345 = vmax.f32 %v1343, %v1344
    %v1346 = vmax.f32 %v844, %v846
    %v1347 = vrot.slane %v1346, 4
    %v1348 = vmax.f32 %v1346, %v1347
    %v1349 = vrot.slane %v1348, 2
    %v1350 = vmax.f32 %v1348, %v1349
    %v1351 = vrot.slane %v1350, 1
    %v1352 = vmax.f32 %v1350, %v1351
    %v1353 = vmax.f32 %v1317, %v1319
    %v1354 = vrot.slane %v1353, 4
    %v1355 = vmax.f32 %v1353, %v1354
    %v1356 = vrot.slane %v1355, 2
    %v1357 = vmax.f32 %v1355, %v1356
    %v1358 = vrot.slane %v1357, 1
    %v1359 = vmax.f32 %v1357, %v1358
    %v1360 = vmax.f32 %v1318, %v1320
    %v1361 = vrot.slane %v1360, 4
    %v1362 = vmax.f32 %v1360, %v1361
    %v1363 = vrot.slane %v1362, 2
    %v1364 = vmax.f32 %v1362, %v1363
    %v1365 = vrot.slane %v1364, 1
    %v1366 = vmax.f32 %v1364, %v1365
    %v1367 = vmax.f32 %v458, %v460
    %v1368 = vrot.slane %v1367, 4
    %v1369 = vmax.f32 %v1367, %v1368
    %v1370 = vrot.slane %v1369, 2
    %v1371 = vmax.f32 %v1369, %v1370
    %v1372 = vrot.slane %v1371, 1
    %v1373 = vmax.f32 %v1371, %v1372
    %v1374 = vmax.f32 %v459, %v461
    %v1375 = vrot.slane %v1374, 4
    %v1376 = vmax.f32 %v1374, %v1375
    %v1377 = vrot.slane %v1376, 2
    %v1378 = vmax.f32 %v1376, %v1377
    %v1379 = vrot.slane %v1378, 1
    %v1380 = vmax.f32 %v1378, %v1379
    %v1381 = vmax.f32 %v847, %v849
    %v1382 = vrot.slane %v1381, 4
    %v1383 = vmax.f32 %v1381, %v1382
    %v1384 = vrot.slane %v1383, 2
    %v1385 = vmax.f32 %v1383, %v1384
    %v1386 = vrot.slane %v1385, 1
    %v1387 = vmax.f32 %v1385, %v1386
    %v1388 = vmax.f32 %v848, %v850
    %v1389 = vrot.slane %v1388, 4
    %v1390 = vmax.f32 %v1388, %v1389
    %v1391 = vrot.slane %v1390, 2
    %v1392 = vmax.f32 %v1390, %v1391
    %v1393 = vrot.slane %v1392, 1
    %v1394 = vmax.f32 %v1392, %v1393
    %v1395 = vmax.f32 %v1321, %v1323
    %v1396 = vrot.slane %v1395, 4
    %v1397 = vmax.f32 %v1395, %v1396
    %v1398 = vrot.slane %v1397, 2
    %v1399 = vmax.f32 %v1397, %v1398
    %v1400 = vrot.slane %v1399, 1
    %v1401 = vmax.f32 %v1399, %v1400
    %v1402 = vmax.f32 %v1322, %v1324
    %v1403 = vrot.slane %v1402, 4
    %v1404 = vmax.f32 %v1402, %v1403
    %v1405 = vrot.slane %v1404, 2
    %v1406 = vmax.f32 %v1404, %v1405
    %v1407 = vrot.slane %v1406, 1
    %v1408 = vmax.f32 %v1406, %v1407
    %vm1409 = vcmask 1040384
    %v1410 = vsel %vm1409, %v1331, %v1373
    %v1411 = vsel %vm1409, %v1338, %v1380
    %v1412 = vsel %vm1409, %v1345, %v1387
    %v1413 = vsel %vm1409, %v1352, %v1394
    %v1414 = vsel %vm1409, %v1359, %v1401
    %v1415 = vsel %vm1409, %v1366, %v1408
    %v1422 = vcombine.low %v1410, %v1411
    %v1423 = vcombine.low %v1412, %v1413
    %v1425 = vunpack.c.l.s4 1983009808
    %v1426 = vunpack.c.0.s8 %v1425
    %v1427 = vlaneseq
    %v1428 = vshrl.u32 %v1427, 7
    %v1429 = vsub.s32 %v1426, %v1428
    %v1430 = vrot.slane %v1422, %v1429
    %v1432 = vunpack.c.l.s4 1983009808
    %v1433 = vunpack.c.0.s8 %v1432
    %v1434 = vlaneseq
    %v1435 = vshrl.u32 %v1434, 7
    %v1436 = vsub.s32 %v1433, %v1435
    %v1437 = vrot.slane %v1423, %v1436
    %v1438 = vcombine.low %v1430, %v1437
    %v1439 = vcombine.low %v1414, %v1415
    %v1441 = vunpack.c.l.s4 1983009808
    %v1442 = vunpack.c.0.s8 %v1441
    %v1443 = vlaneseq
    %v1444 = vshrl.u32 %v1443, 7
    %v1445 = vsub.s32 %v1442, %v1444
    %v1446 = vrot.slane %v1439, %v1445
    %1449 = vst [vmem:[#allocation8] sm:$0xff] %v1438
    %1450 = vst [vmem:[#allocation8 + $0x8] sm:$0xf] %v1446
    // Predicated region
    $region26: #{textcnn_forward.1} parent=1 // pred_check
      _
    $region27: #{textcnn_forward.1} parent=1 // pred_check_branch
      %1452 = sbr.rel (0) target = $region29
    $region28: #{textcnn_forward.1} parent=1 // pred_region
      %s1454 = ssub.s32 192, 192
      %1455 = vsyncadd [#allocation4], %s1454
      %s1457 = sshll.u32 [#allocation8], 4
      %s1458 = int_to_ptr.vmem [resolvable:$true] %s1457
      %1460 = dma.vmem_to_hbm [thread:$0]  %s1458, 192, %s3, [#allocation4]
    $region29: #{textcnn_forward.1} parent=1 // pred_fallthru
      _
    // Predicated region
    $region30: #{textcnn_forward.1} parent=1 // pred_check
      _
    $region31: #{textcnn_forward.1} parent=1 // pred_check_branch
      %1462 = sbr.rel (0) target = $region33
    $region32: #{textcnn_forward.1} parent=1 // pred_region
      %1463 = dma.done [#allocation4], 192
    $region33: #{textcnn_forward.1} parent=1 // pred_fallthru
      _
    %1464 = vsyncpa [#allocation3], 1
    %1465 = vsyncpa [#allocation6], 1
    %1466 = vsyncpa [#allocation4], 1

</llo_original>
